<compile_context>
chip_gen: v5e
topology: v5e:2x2
jax: 0.10.0
libtpu: 0.0.40
codegen_flags: <defaults>
</compile_context>

<pallas_src>
import numpy as np
import jax
import jax.numpy as jnp
from jax import lax
from jax.experimental import pallas as pl
from jax.experimental.pallas import tpu as pltpu

BLANK = 0
NEG = -1e30          # finite stand-in for -inf (keeps logsumexp NaN-free)
LP = 128             # padded extended-label length (must be >= 2*S_max + 1)
B_BLK = 8            # samples packed per grid step (sublane dim of a vreg)


def ctc_kernel(in_len_ref, tgt_len_ref, tgt_ref, sel_ref, selp_ref, logp_ref,
               out_ref, g_ref, alpha_ref):
    B, T_BLK, C = logp_ref.shape
    LPk = sel_ref.shape[1]
    t_idx = pl.program_id(1)
    n_t = pl.num_programs(1)

    in_len = in_len_ref[...]                       # (B, 1) int32
    tgt_len = tgt_len_ref[...]                     # (B, 1) int32
    tgt = tgt_ref[...]                             # (B, S) float32 class ids

    # ---- extended label sequence (blank, t0, blank, t1, ..., blank), one row per sample
    ext_tgt_i = jnp.dot(tgt, sel_ref[...],
                        preferred_element_type=jnp.float32).astype(jnp.int32)    # (B, LP)
    ext_prev_i = jnp.dot(tgt, selp_ref[...],
                         preferred_element_type=jnp.float32).astype(jnp.int32)   # (B, LP)

    l_iota = lax.broadcasted_iota(jnp.int32, (B, LPk), 1)
    odd = (l_iota % 2) == 1
    ext_label_i = jnp.where(odd, ext_tgt_i, BLANK)                 # (B, LP)
    # skip transition allowed: odd l, l >= 3, label != blank, label != label[l-2]
    skip = odd & (l_iota >= 3) & (ext_tgt_i != BLANK) & (ext_tgt_i != ext_prev_i)
    mask_ge1 = l_iota >= 1
    init_mask = (l_iota == 0) | ((l_iota == 1) & (tgt_len >= 1))

    # ---- G[t, b, l] = logp[b, t, ext_label[b, l]] for this time tile
    #      (one-hot matmul per sample -> MXU); stored as (t_blk, B, LP) so g_ref[t] is one
    #      aligned (8,128) vreg load in the DP loop.
    c_iota = lax.broadcasted_iota(jnp.int32, (C, LPk), 0)
    for b in range(B):                                             # static unrolled loop
        onehot_b = (c_iota == ext_label_i[b:b + 1, :]).astype(jnp.float32)        # (C, LP)
        g_ref[:, b, :] = jnp.dot(logp_ref[b], onehot_b,
                                 preferred_element_type=jnp.float32)              # (Tb, LP)

    # ---- reset the carried alpha at the start of every sample block
    @pl.when(t_idx == 0)
    def _():
        alpha_ref[...] = jnp.full(alpha_ref.shape, NEG, dtype=alpha_ref.dtype)

    t_base = t_idx * T_BLK

    # ---- CTC forward DP over this time tile; alpha stays vreg-resident (loop carry)
    def body(t, alpha):
        g_t = g_ref[t]                                             # aligned (B, LP) load
        a1 = jnp.where(mask_ge1, pltpu.roll(alpha, shift=1, axis=1), NEG)
        a2 = jnp.where(skip, pltpu.roll(alpha, shift=2, axis=1), NEG)
        m = jnp.maximum(jnp.maximum(alpha, a1), a2)
        lse = m + jnp.log(jnp.exp(alpha - m) + jnp.exp(a1 - m) + jnp.exp(a2 - m))
        new_alpha = lse + g_t
        t_glob = t_base + t
        # fold the t == 0 initialization into the same uniform body (scalar select)
        new_alpha = jnp.where(t_glob == 0, jnp.where(init_mask, g_t, NEG), new_alpha)
        # per-sample input-length masking (ragged lengths within the 8-sample block)
        return jnp.where(t_glob < in_len, new_alpha, alpha)

    alpha = lax.fori_loop(0, T_BLK, body, alpha_ref[...], unroll=True)
    alpha_ref[...] = alpha

    # ---- finalize on the last time tile:
    #      loss = -logaddexp(alpha[2*tl], alpha[2*tl - 1])  (per sample)
    @pl.when(t_idx == n_t - 1)
    def _():
        idx_last = 2 * tgt_len                                     # (B, 1)
        v_last = jnp.max(jnp.where(l_iota == idx_last, alpha, NEG),
                         axis=1, keepdims=True)
        v_prev = jnp.max(jnp.where((l_iota == idx_last - 1) & (tgt_len >= 1), alpha, NEG),
                         axis=1, keepdims=True)
        m2 = jnp.maximum(v_last, v_prev)
        ll = m2 + jnp.log(jnp.exp(v_last - m2) + jnp.exp(v_prev - m2))
        loss = -ll
        loss = jnp.where(loss > 1e29, 0.0, loss)                   # zero_infinity=True
        loss = loss / jnp.maximum(tgt_len, 1).astype(jnp.float32)  # per-sample part of 'mean'
        out_ref[...] = jnp.broadcast_to(loss, out_ref.shape)


def ctc_loss_pallas(log_probs_tnc, targets, input_lengths, target_lengths, t_blk=128):
    """CTC loss, blank=0, zero_infinity=True, reduction='mean' (torch nn.CTCLoss defaults)."""
    T, N, C = log_probs_tnc.shape
    S = targets.shape[1]
    assert 2 * S + 1 <= LP, "max target length too large for LP padding"

    # ---- batch padding to a multiple of B_BLK
    n_pad = (-N) % B_BLK
    NP = N + n_pad

    # ---- time tiling (t_blk must be a multiple of 8 unless it covers the whole T axis)
    t_blk = max(1, min(int(t_blk), T))
    if t_blk != T:
        t_blk = max(8, (t_blk // 8) * 8)
    t_pad = (-T) % t_blk
    TP = T + t_pad

    logp_ntc = jnp.transpose(log_probs_tnc, (1, 0, 2)).astype(jnp.float32)   # (N, T, C)
    logp_ntc = jnp.pad(logp_ntc, ((0, n_pad), (0, t_pad), (0, 0)))
    tgt_f = jnp.pad(targets.astype(jnp.float32), ((0, n_pad), (0, 0)))
    in_len = jnp.pad(input_lengths.astype(jnp.int32), ((0, n_pad),),
                     constant_values=1).reshape(NP, 1)
    tgt_len = jnp.pad(target_lengths.astype(jnp.int32), ((0, n_pad),),
                      constant_values=0).reshape(NP, 1)

    # grid-invariant one-hot selectors: pick targets[(l-1)//2] and targets[(l-1)//2 - 1]
    l_ids = np.arange(LP)
    s_ids = np.arange(S)[:, None]
    odd = (l_ids % 2) == 1
    sel = (odd[None, :] & ((l_ids[None, :] // 2) == s_ids)).astype(np.float32)        # (S, LP)
    selp = (odd[None, :] & ((l_ids[None, :] // 2 - 1) == s_ids)).astype(np.float32)   # (S, LP)
    sel = jnp.asarray(sel)
    selp = jnp.asarray(selp)

    out = pl.pallas_call(
        ctc_kernel,
        out_shape=jax.ShapeDtypeStruct((NP, 128), jnp.float32),
        grid=(NP // B_BLK, TP // t_blk),
        in_specs=[
            pl.BlockSpec((B_BLK, 1), lambda n, t: (n, 0)),            # input_lengths
            pl.BlockSpec((B_BLK, 1), lambda n, t: (n, 0)),            # target_lengths
            pl.BlockSpec((B_BLK, S), lambda n, t: (n, 0)),            # targets (as f32)
            pl.BlockSpec((S, LP), lambda n, t: (0, 0)),               # sel
            pl.BlockSpec((S, LP), lambda n, t: (0, 0)),               # sel_prev
            pl.BlockSpec((B_BLK, t_blk, C), lambda n, t: (n, t, 0)),  # log-probs (N,T,C)
        ],
        out_specs=pl.BlockSpec((B_BLK, 128), lambda n, t: (n, 0)),
        scratch_shapes=[
            pltpu.VMEM((t_blk, B_BLK, LP), jnp.float32),              # G[t, b, l] per tile
            pltpu.VMEM((B_BLK, LP), jnp.float32),                     # alpha carried over tiles
        ],
        compiler_params=pltpu.CompilerParams(
            dimension_semantics=("parallel", "arbitrary")),
    )(in_len, tgt_len, tgt_f, sel, selp, logp_ntc)

    per_sample = out[:N, 0]
    return jnp.mean(per_sample)      # batch mean of (loss_n / max(target_len_n, 1))


def text_loss(inputs, y_true_recog, y_pred_recog, t_blk=128):
    """Pallas equivalent of TextLoss.forward(inputs, y_true_recog, y_pred_recog)."""
    # text_pred = inputs[:, 0]   # unused by the loss (torch only prints its shape)
    # TODO(synk): torch prints gt/pred/inputs tensors; debug prints intentionally omitted.
    gt_targets, gt_lengths = y_true_recog
    pred_logp, pred_lengths = y_pred_recog
    return ctc_loss_pallas(pred_logp, gt_targets, pred_lengths, gt_lengths, t_blk=t_blk)


# ------------------------- pure NumPy reference (for verification) -------------------------
def ctc_ref_numpy(logp, targets, in_lens, tgt_lens, blank=0):
    T, N, C = logp.shape
    losses = []
    for n in range(N):
        ti, tl = int(in_lens[n]), int(tgt_lens[n])
        tgt = targets[n, :tl]
        ext = [blank]
        for s in tgt:
            ext += [int(s), blank]
        L = len(ext)
        alpha = np.full(L, NEG, dtype=np.float64)
        alpha[0] = logp[0, n, blank]
        if L > 1:
            alpha[1] = logp[0, n, ext[1]]
        for t in range(1, ti):
            new = np.full(L, NEG, dtype=np.float64)
            for l in range(L):
                cands = [alpha[l]]
                if l >= 1:
                    cands.append(alpha[l - 1])
                if l >= 2 and ext[l] != blank and ext[l] != ext[l - 2]:
                    cands.append(alpha[l - 2])
                m = max(cands)
                new[l] = m + np.log(sum(np.exp(c - m) for c in cands)) + logp[t, n, ext[l]]
            alpha = new
        cands = [alpha[L - 1]] + ([alpha[L - 2]] if L >= 2 else [])
        m = max(cands)
        ll = m + np.log(sum(np.exp(c - m) for c in cands))
        loss = -ll
        if loss > 1e29:
            loss = 0.0
        losses.append(loss / max(tl, 1))
    return float(np.mean(losses))


if __name__ == "__main__":
    key = jax.random.PRNGKey(0)
    N, C_in, H, W = 2, 4, 16, 16      # segmentation-style `inputs` (unused by the loss)
    T, C_cls, S = 16, 32, 8           # CTC: time steps, #classes (0 = blank), max target len
    k1, k2, k3 = jax.random.split(key, 3)

    inputs = jax.random.normal(k1, (N, C_in, H, W), jnp.float32)
    logits = jax.random.normal(k2, (T, N, C_cls), jnp.float32)
    log_probs = jax.nn.log_softmax(logits, axis=-1)                      # (T, N, C)
    targets = jax.random.randint(k3, (N, S), 1, C_cls, dtype=jnp.int32)  # labels, no blanks
    input_lengths = jnp.array([T, T - 3], dtype=jnp.int32)
    target_lengths = jnp.array([S, S - 2], dtype=jnp.int32)

    # t_blk=8 -> two time tiles, exercising the carried-alpha (multi-tile) path.
    loss = text_loss(inputs, (targets, target_lengths), (log_probs, input_lengths), t_blk=8)
    loss = jax.block_until_ready(loss)

    ref = ctc_ref_numpy(np.asarray(log_probs, dtype=np.float64),
                        np.asarray(targets),
                        np.asarray(input_lengths),
                        np.asarray(target_lengths))
    np.testing.assert_allclose(float(loss), ref, rtol=1e-4, atol=1e-5)
    print("KERNEL_OK")
</pallas_src>

<mosaic_0001>
module attributes {stable_mosaic.version = 11 : i64} {
  func.func @ctc_kernel(%arg0: i32, %arg1: i32, %arg2: memref<8x1xi32, #tpu.memory_space<vmem>>, %arg3: memref<8x1xi32, #tpu.memory_space<vmem>>, %arg4: memref<8x8xf32, #tpu.memory_space<vmem>>, %arg5: memref<8x128xf32, #tpu.memory_space<vmem>>, %arg6: memref<8x128xf32, #tpu.memory_space<vmem>>, %arg7: memref<8x8x32xf32, #tpu.memory_space<vmem>>, %arg8: memref<8x128xf32, #tpu.memory_space<vmem>>, %arg9: memref<8x8x128xf32, #tpu.memory_space<vmem>>, %arg10: memref<8x128xf32, #tpu.memory_space<vmem>>) attributes {dimension_semantics = [#tpu.dimension_semantics<parallel>, #tpu.dimension_semantics<arbitrary>], iteration_bounds = array<i64: 1, 2>, scalar_prefetch = 0 : i64, scratch_operands = 2 : i64, tpu.core_type = #tpu.core_type<tc>, window_params = [{transform_indices = @transform_0, window_bounds = array<i64: 8, 1>}, {transform_indices = @transform_1, window_bounds = array<i64: 8, 1>}, {transform_indices = @transform_2, window_bounds = array<i64: 8, 8>}, {pipeline_mode = #tpu.pipeline_mode<synchronous>, transform_indices = @transform_3, window_bounds = array<i64: 8, 128>}, {pipeline_mode = #tpu.pipeline_mode<synchronous>, transform_indices = @transform_4, window_bounds = array<i64: 8, 128>}, {transform_indices = @transform_5, window_bounds = array<i64: 8, 8, 32>}, {transform_indices = @transform_6, window_bounds = array<i64: 8, 128>}]} {
    %c0 = arith.constant 0 : index
    %c0_0 = arith.constant 0 : index
    %0 = vector.load %arg2[%c0, %c0_0] : memref<8x1xi32, #tpu.memory_space<vmem>>, vector<8x1xi32>
    %c0_1 = arith.constant 0 : index
    %c0_2 = arith.constant 0 : index
    %1 = vector.load %arg3[%c0_1, %c0_2] : memref<8x1xi32, #tpu.memory_space<vmem>>, vector<8x1xi32>
    %c0_3 = arith.constant 0 : index
    %c0_4 = arith.constant 0 : index
    %2 = vector.load %arg4[%c0_3, %c0_4] : memref<8x8xf32, #tpu.memory_space<vmem>>, vector<8x8xf32>
    %c0_5 = arith.constant 0 : index
    %c0_6 = arith.constant 0 : index
    %3 = vector.load %arg5[%c0_5, %c0_6] : memref<8x128xf32, #tpu.memory_space<vmem>>, vector<8x128xf32>
    %cst = arith.constant dense<0.000000e+00> : vector<8x128xf32>
    %4 = tpu.matmul %2, %3, %cst {dimension_numbers = #tpu.dot_dimension_numbers<[1], [0], [0], [1], [0, 0, 1, 1], [], []>} : vector<8x8xf32>, vector<8x128xf32>, vector<8x128xf32> -> vector<8x128xf32>
    %5 = arith.fptosi %4 : vector<8x128xf32> to vector<8x128xi32>
    %c0_7 = arith.constant 0 : index
    %c0_8 = arith.constant 0 : index
    %6 = vector.load %arg6[%c0_7, %c0_8] : memref<8x128xf32, #tpu.memory_space<vmem>>, vector<8x128xf32>
    %cst_9 = arith.constant dense<0.000000e+00> : vector<8x128xf32>
    %7 = tpu.matmul %2, %6, %cst_9 {dimension_numbers = #tpu.dot_dimension_numbers<[1], [0], [0], [1], [0, 0, 1, 1], [], []>} : vector<8x8xf32>, vector<8x128xf32>, vector<8x128xf32> -> vector<8x128xf32>
    %8 = arith.fptosi %7 : vector<8x128xf32> to vector<8x128xi32>
    %9 = tpu.iota {dimensions = array<i32: 1>} : vector<8x128xi32>
    %c2_i32 = arith.constant 2 : i32
    %c0_i32 = arith.constant 0 : i32
    %10 = arith.cmpi eq, %c2_i32, %c0_i32 : i32
    %c1_i32 = arith.constant 1 : i32
    %11 = arith.select %10, %c1_i32, %c2_i32 : i32
    %12 = vector.broadcast %11 : i32 to vector<8x128xi32>
    %13 = arith.remsi %9, %12 : vector<8x128xi32>
    %c0_i32_10 = arith.constant 0 : i32
    %14 = vector.broadcast %c0_i32_10 : i32 to vector<8x128xi32>
    %15 = arith.cmpi ne, %13, %14 : vector<8x128xi32>
    %c0_i32_11 = arith.constant 0 : i32
    %16 = vector.broadcast %c0_i32_11 : i32 to vector<8x128xi32>
    %17 = arith.cmpi slt, %13, %16 : vector<8x128xi32>
    %c0_i32_12 = arith.constant 0 : i32
    %18 = arith.cmpi slt, %11, %c0_i32_12 : i32
    %19 = vector.broadcast %18 : i1 to vector<8x128xi1>
    %20 = vector.broadcast %19 : vector<8x128xi1> to vector<8x128xi1>
    %21 = arith.xori %17, %20 : vector<8x128xi1>
    %22 = arith.andi %21, %15 : vector<8x128xi1>
    %23 = vector.broadcast %11 : i32 to vector<8x128xi32>
    %24 = arith.addi %13, %23 : vector<8x128xi32>
    %25 = arith.select %22, %24, %13 : vector<8x128xi1>, vector<8x128xi32>
    %c1_i32_13 = arith.constant 1 : i32
    %26 = vector.broadcast %c1_i32_13 : i32 to vector<8x128xi32>
    %27 = arith.cmpi eq, %25, %26 : vector<8x128xi32>
    %c0_i32_14 = arith.constant 0 : i32
    %28 = vector.broadcast %c0_i32_14 : i32 to vector<8x128xi32>
    %29 = arith.select %27, %5, %28 : vector<8x128xi1>, vector<8x128xi32>
    %c3_i32 = arith.constant 3 : i32
    %30 = vector.broadcast %c3_i32 : i32 to vector<8x128xi32>
    %31 = arith.cmpi sge, %9, %30 : vector<8x128xi32>
    %32 = arith.andi %27, %31 : vector<8x128xi1>
    %c0_i32_15 = arith.constant 0 : i32
    %33 = vector.broadcast %c0_i32_15 : i32 to vector<8x128xi32>
    %34 = arith.cmpi ne, %5, %33 : vector<8x128xi32>
    %35 = arith.andi %32, %34 : vector<8x128xi1>
    %36 = arith.cmpi ne, %5, %8 : vector<8x128xi32>
    %37 = arith.andi %35, %36 : vector<8x128xi1>
    %c1_i32_16 = arith.constant 1 : i32
    %38 = vector.broadcast %c1_i32_16 : i32 to vector<8x128xi32>
    %39 = arith.cmpi sge, %9, %38 : vector<8x128xi32>
    %c0_i32_17 = arith.constant 0 : i32
    %40 = vector.broadcast %c0_i32_17 : i32 to vector<8x128xi32>
    %41 = arith.cmpi eq, %9, %40 : vector<8x128xi32>
    %c1_i32_18 = arith.constant 1 : i32
    %42 = vector.broadcast %c1_i32_18 : i32 to vector<8x128xi32>
    %43 = arith.cmpi eq, %9, %42 : vector<8x128xi32>
    %c1_i32_19 = arith.constant 1 : i32
    %44 = vector.broadcast %c1_i32_19 : i32 to vector<8x1xi32>
    %45 = arith.cmpi sge, %1, %44 : vector<8x1xi32>
    %46 = vector.broadcast %45 : vector<8x1xi1> to vector<8x128xi1>
    %47 = arith.andi %43, %46 : vector<8x128xi1>
    %48 = arith.ori %41, %47 : vector<8x128xi1>
    %49 = tpu.iota {dimensions = array<i32: 0>} : vector<32x128xi32>
    %50 = vector.extract_strided_slice %29 {offsets = [0, 0], sizes = [1, 128], strides = [1, 1]} : vector<8x128xi32> to vector<1x128xi32>
    %51 = vector.broadcast %50 : vector<1x128xi32> to vector<32x128xi32>
    %52 = arith.cmpi eq, %49, %51 : vector<32x128xi32>
    %53 = arith.extui %52 : vector<32x128xi1> to vector<32x128xi32>
    %54 = arith.sitofp %53 : vector<32x128xi32> to vector<32x128xf32>
    %c0_20 = arith.constant 0 : index
    %c0_21 = arith.constant 0 : index
    %c0_22 = arith.constant 0 : index
    %55 = vector.load %arg7[%c0_20, %c0_21, %c0_22] : memref<8x8x32xf32, #tpu.memory_space<vmem>>, vector<1x8x32xf32>
    %56 = vector.shape_cast %55 : vector<1x8x32xf32> to vector<8x32xf32>
    %cst_23 = arith.constant dense<0.000000e+00> : vector<8x128xf32>
    %57 = tpu.matmul %56, %54, %cst_23 {dimension_numbers = #tpu.dot_dimension_numbers<[1], [0], [0], [1], [0, 0, 1, 1], [], []>} : vector<8x32xf32>, vector<32x128xf32>, vector<8x128xf32> -> vector<8x128xf32>
    %c0_24 = arith.constant 0 : index
    %c0_25 = arith.constant 0 : index
    %c0_26 = arith.constant 0 : index
    %58 = vector.load %arg9[%c0_24, %c0_25, %c0_26] : memref<8x8x128xf32, #tpu.memory_space<vmem>>, vector<8x1x128xf32>
    %59 = vector.shape_cast %58 : vector<8x1x128xf32> to vector<8x128xf32>
    %60 = vector.shape_cast %57 : vector<8x128xf32> to vector<8x1x128xf32>
    tpu.vector_store %arg9[%c0_24, %c0_25, %c0_26], %60 {strides = array<i32>} : memref<8x8x128xf32, #tpu.memory_space<vmem>>, vector<8x1x128xf32>,
    %61 = vector.extract_strided_slice %29 {offsets = [1, 0], sizes = [1, 128], strides = [1, 1]} : vector<8x128xi32> to vector<1x128xi32>
    %62 = vector.broadcast %61 : vector<1x128xi32> to vector<32x128xi32>
    %63 = arith.cmpi eq, %49, %62 : vector<32x128xi32>
    %64 = arith.extui %63 : vector<32x128xi1> to vector<32x128xi32>
    %65 = arith.sitofp %64 : vector<32x128xi32> to vector<32x128xf32>
    %c1 = arith.constant 1 : index
    %c0_27 = arith.constant 0 : index
    %c0_28 = arith.constant 0 : index
    %66 = vector.load %arg7[%c1, %c0_27, %c0_28] : memref<8x8x32xf32, #tpu.memory_space<vmem>>, vector<1x8x32xf32>
    %67 = vector.shape_cast %66 : vector<1x8x32xf32> to vector<8x32xf32>
    %cst_29 = arith.constant dense<0.000000e+00> : vector<8x128xf32>
    %68 = tpu.matmul %67, %65, %cst_29 {dimension_numbers = #tpu.dot_dimension_numbers<[1], [0], [0], [1], [0, 0, 1, 1], [], []>} : vector<8x32xf32>, vector<32x128xf32>, vector<8x128xf32> -> vector<8x128xf32>
    %c0_30 = arith.constant 0 : index
    %c1_31 = arith.constant 1 : index
    %c0_32 = arith.constant 0 : index
    %69 = vector.load %arg9[%c0_30, %c1_31, %c0_32] : memref<8x8x128xf32, #tpu.memory_space<vmem>>, vector<8x1x128xf32>
    %70 = vector.shape_cast %69 : vector<8x1x128xf32> to vector<8x128xf32>
    %71 = vector.shape_cast %68 : vector<8x128xf32> to vector<8x1x128xf32>
    tpu.vector_store %arg9[%c0_30, %c1_31, %c0_32], %71 {strides = array<i32>} : memref<8x8x128xf32, #tpu.memory_space<vmem>>, vector<8x1x128xf32>,
    %72 = vector.extract_strided_slice %29 {offsets = [2, 0], sizes = [1, 128], strides = [1, 1]} : vector<8x128xi32> to vector<1x128xi32>
    %73 = vector.broadcast %72 : vector<1x128xi32> to vector<32x128xi32>
    %74 = arith.cmpi eq, %49, %73 : vector<32x128xi32>
    %75 = arith.extui %74 : vector<32x128xi1> to vector<32x128xi32>
    %76 = arith.sitofp %75 : vector<32x128xi32> to vector<32x128xf32>
    %c2 = arith.constant 2 : index
    %c0_33 = arith.constant 0 : index
    %c0_34 = arith.constant 0 : index
    %77 = vector.load %arg7[%c2, %c0_33, %c0_34] : memref<8x8x32xf32, #tpu.memory_space<vmem>>, vector<1x8x32xf32>
    %78 = vector.shape_cast %77 : vector<1x8x32xf32> to vector<8x32xf32>
    %cst_35 = arith.constant dense<0.000000e+00> : vector<8x128xf32>
    %79 = tpu.matmul %78, %76, %cst_35 {dimension_numbers = #tpu.dot_dimension_numbers<[1], [0], [0], [1], [0, 0, 1, 1], [], []>} : vector<8x32xf32>, vector<32x128xf32>, vector<8x128xf32> -> vector<8x128xf32>
    %c0_36 = arith.constant 0 : index
    %c2_37 = arith.constant 2 : index
    %c0_38 = arith.constant 0 : index
    %80 = vector.load %arg9[%c0_36, %c2_37, %c0_38] : memref<8x8x128xf32, #tpu.memory_space<vmem>>, vector<8x1x128xf32>
    %81 = vector.shape_cast %80 : vector<8x1x128xf32> to vector<8x128xf32>
    %82 = vector.shape_cast %79 : vector<8x128xf32> to vector<8x1x128xf32>
    tpu.vector_store %arg9[%c0_36, %c2_37, %c0_38], %82 {strides = array<i32>} : memref<8x8x128xf32, #tpu.memory_space<vmem>>, vector<8x1x128xf32>,
    %83 = vector.extract_strided_slice %29 {offsets = [3, 0], sizes = [1, 128], strides = [1, 1]} : vector<8x128xi32> to vector<1x128xi32>
    %84 = vector.broadcast %83 : vector<1x128xi32> to vector<32x128xi32>
    %85 = arith.cmpi eq, %49, %84 : vector<32x128xi32>
    %86 = arith.extui %85 : vector<32x128xi1> to vector<32x128xi32>
    %87 = arith.sitofp %86 : vector<32x128xi32> to vector<32x128xf32>
    %c3 = arith.constant 3 : index
    %c0_39 = arith.constant 0 : index
    %c0_40 = arith.constant 0 : index
    %88 = vector.load %arg7[%c3, %c0_39, %c0_40] : memref<8x8x32xf32, #tpu.memory_space<vmem>>, vector<1x8x32xf32>
    %89 = vector.shape_cast %88 : vector<1x8x32xf32> to vector<8x32xf32>
    %cst_41 = arith.constant dense<0.000000e+00> : vector<8x128xf32>
    %90 = tpu.matmul %89, %87, %cst_41 {dimension_numbers = #tpu.dot_dimension_numbers<[1], [0], [0], [1], [0, 0, 1, 1], [], []>} : vector<8x32xf32>, vector<32x128xf32>, vector<8x128xf32> -> vector<8x128xf32>
    %c0_42 = arith.constant 0 : index
    %c3_43 = arith.constant 3 : index
    %c0_44 = arith.constant 0 : index
    %91 = vector.load %arg9[%c0_42, %c3_43, %c0_44] : memref<8x8x128xf32, #tpu.memory_space<vmem>>, vector<8x1x128xf32>
    %92 = vector.shape_cast %91 : vector<8x1x128xf32> to vector<8x128xf32>
    %93 = vector.shape_cast %90 : vector<8x128xf32> to vector<8x1x128xf32>
    tpu.vector_store %arg9[%c0_42, %c3_43, %c0_44], %93 {strides = array<i32>} : memref<8x8x128xf32, #tpu.memory_space<vmem>>, vector<8x1x128xf32>,
    %94 = vector.extract_strided_slice %29 {offsets = [4, 0], sizes = [1, 128], strides = [1, 1]} : vector<8x128xi32> to vector<1x128xi32>
    %95 = vector.broadcast %94 : vector<1x128xi32> to vector<32x128xi32>
    %96 = arith.cmpi eq, %49, %95 : vector<32x128xi32>
    %97 = arith.extui %96 : vector<32x128xi1> to vector<32x128xi32>
    %98 = arith.sitofp %97 : vector<32x128xi32> to vector<32x128xf32>
    %c4 = arith.constant 4 : index
    %c0_45 = arith.constant 0 : index
    %c0_46 = arith.constant 0 : index
    %99 = vector.load %arg7[%c4, %c0_45, %c0_46] : memref<8x8x32xf32, #tpu.memory_space<vmem>>, vector<1x8x32xf32>
    %100 = vector.shape_cast %99 : vector<1x8x32xf32> to vector<8x32xf32>
    %cst_47 = arith.constant dense<0.000000e+00> : vector<8x128xf32>
    %101 = tpu.matmul %100, %98, %cst_47 {dimension_numbers = #tpu.dot_dimension_numbers<[1], [0], [0], [1], [0, 0, 1, 1], [], []>} : vector<8x32xf32>, vector<32x128xf32>, vector<8x128xf32> -> vector<8x128xf32>
    %c0_48 = arith.constant 0 : index
    %c4_49 = arith.constant 4 : index
    %c0_50 = arith.constant 0 : index
    %102 = vector.load %arg9[%c0_48, %c4_49, %c0_50] : memref<8x8x128xf32, #tpu.memory_space<vmem>>, vector<8x1x128xf32>
    %103 = vector.shape_cast %102 : vector<8x1x128xf32> to vector<8x128xf32>
    %104 = vector.shape_cast %101 : vector<8x128xf32> to vector<8x1x128xf32>
    tpu.vector_store %arg9[%c0_48, %c4_49, %c0_50], %104 {strides = array<i32>} : memref<8x8x128xf32, #tpu.memory_space<vmem>>, vector<8x1x128xf32>,
    %105 = vector.extract_strided_slice %29 {offsets = [5, 0], sizes = [1, 128], strides = [1, 1]} : vector<8x128xi32> to vector<1x128xi32>
    %106 = vector.broadcast %105 : vector<1x128xi32> to vector<32x128xi32>
    %107 = arith.cmpi eq, %49, %106 : vector<32x128xi32>
    %108 = arith.extui %107 : vector<32x128xi1> to vector<32x128xi32>
    %109 = arith.sitofp %108 : vector<32x128xi32> to vector<32x128xf32>
    %c5 = arith.constant 5 : index
    %c0_51 = arith.constant 0 : index
    %c0_52 = arith.constant 0 : index
    %110 = vector.load %arg7[%c5, %c0_51, %c0_52] : memref<8x8x32xf32, #tpu.memory_space<vmem>>, vector<1x8x32xf32>
    %111 = vector.shape_cast %110 : vector<1x8x32xf32> to vector<8x32xf32>
    %cst_53 = arith.constant dense<0.000000e+00> : vector<8x128xf32>
    %112 = tpu.matmul %111, %109, %cst_53 {dimension_numbers = #tpu.dot_dimension_numbers<[1], [0], [0], [1], [0, 0, 1, 1], [], []>} : vector<8x32xf32>, vector<32x128xf32>, vector<8x128xf32> -> vector<8x128xf32>
    %c0_54 = arith.constant 0 : index
    %c5_55 = arith.constant 5 : index
    %c0_56 = arith.constant 0 : index
    %113 = vector.load %arg9[%c0_54, %c5_55, %c0_56] : memref<8x8x128xf32, #tpu.memory_space<vmem>>, vector<8x1x128xf32>
    %114 = vector.shape_cast %113 : vector<8x1x128xf32> to vector<8x128xf32>
    %115 = vector.shape_cast %112 : vector<8x128xf32> to vector<8x1x128xf32>
    tpu.vector_store %arg9[%c0_54, %c5_55, %c0_56], %115 {strides = array<i32>} : memref<8x8x128xf32, #tpu.memory_space<vmem>>, vector<8x1x128xf32>,
    %116 = vector.extract_strided_slice %29 {offsets = [6, 0], sizes = [1, 128], strides = [1, 1]} : vector<8x128xi32> to vector<1x128xi32>
    %117 = vector.broadcast %116 : vector<1x128xi32> to vector<32x128xi32>
    %118 = arith.cmpi eq, %49, %117 : vector<32x128xi32>
    %119 = arith.extui %118 : vector<32x128xi1> to vector<32x128xi32>
    %120 = arith.sitofp %119 : vector<32x128xi32> to vector<32x128xf32>
    %c6 = arith.constant 6 : index
    %c0_57 = arith.constant 0 : index
    %c0_58 = arith.constant 0 : index
    %121 = vector.load %arg7[%c6, %c0_57, %c0_58] : memref<8x8x32xf32, #tpu.memory_space<vmem>>, vector<1x8x32xf32>
    %122 = vector.shape_cast %121 : vector<1x8x32xf32> to vector<8x32xf32>
    %cst_59 = arith.constant dense<0.000000e+00> : vector<8x128xf32>
    %123 = tpu.matmul %122, %120, %cst_59 {dimension_numbers = #tpu.dot_dimension_numbers<[1], [0], [0], [1], [0, 0, 1, 1], [], []>} : vector<8x32xf32>, vector<32x128xf32>, vector<8x128xf32> -> vector<8x128xf32>
    %c0_60 = arith.constant 0 : index
    %c6_61 = arith.constant 6 : index
    %c0_62 = arith.constant 0 : index
    %124 = vector.load %arg9[%c0_60, %c6_61, %c0_62] : memref<8x8x128xf32, #tpu.memory_space<vmem>>, vector<8x1x128xf32>
    %125 = vector.shape_cast %124 : vector<8x1x128xf32> to vector<8x128xf32>
    %126 = vector.shape_cast %123 : vector<8x128xf32> to vector<8x1x128xf32>
    tpu.vector_store %arg9[%c0_60, %c6_61, %c0_62], %126 {strides = array<i32>} : memref<8x8x128xf32, #tpu.memory_space<vmem>>, vector<8x1x128xf32>,
    %127 = vector.extract_strided_slice %29 {offsets = [7, 0], sizes = [1, 128], strides = [1, 1]} : vector<8x128xi32> to vector<1x128xi32>
    %128 = vector.broadcast %127 : vector<1x128xi32> to vector<32x128xi32>
    %129 = arith.cmpi eq, %49, %128 : vector<32x128xi32>
    %130 = arith.extui %129 : vector<32x128xi1> to vector<32x128xi32>
    %131 = arith.sitofp %130 : vector<32x128xi32> to vector<32x128xf32>
    %c7 = arith.constant 7 : index
    %c0_63 = arith.constant 0 : index
    %c0_64 = arith.constant 0 : index
    %132 = vector.load %arg7[%c7, %c0_63, %c0_64] : memref<8x8x32xf32, #tpu.memory_space<vmem>>, vector<1x8x32xf32>
    %133 = vector.shape_cast %132 : vector<1x8x32xf32> to vector<8x32xf32>
    %cst_65 = arith.constant dense<0.000000e+00> : vector<8x128xf32>
    %134 = tpu.matmul %133, %131, %cst_65 {dimension_numbers = #tpu.dot_dimension_numbers<[1], [0], [0], [1], [0, 0, 1, 1], [], []>} : vector<8x32xf32>, vector<32x128xf32>, vector<8x128xf32> -> vector<8x128xf32>
    %c0_66 = arith.constant 0 : index
    %c7_67 = arith.constant 7 : index
    %c0_68 = arith.constant 0 : index
    %135 = vector.load %arg9[%c0_66, %c7_67, %c0_68] : memref<8x8x128xf32, #tpu.memory_space<vmem>>, vector<8x1x128xf32>
    %136 = vector.shape_cast %135 : vector<8x1x128xf32> to vector<8x128xf32>
    %137 = vector.shape_cast %134 : vector<8x128xf32> to vector<8x1x128xf32>
    tpu.vector_store %arg9[%c0_66, %c7_67, %c0_68], %137 {strides = array<i32>} : memref<8x8x128xf32, #tpu.memory_space<vmem>>, vector<8x1x128xf32>,
    %c0_i32_69 = arith.constant 0 : i32
    %138 = arith.cmpi eq, %arg1, %c0_i32_69 : i32
    %139 = arith.extui %138 : i1 to i32
    %c0_i32_70 = arith.constant 0 : i32
    %140 = arith.cmpi ne, %139, %c0_i32_70 : i32
    scf.if %140 {
      %cst_146 = arith.constant -1.000000e+30 : f32
      %403 = vector.broadcast %cst_146 : f32 to vector<8x128xf32>
      %c0_147 = arith.constant 0 : index
      %c0_148 = arith.constant 0 : index
      %404 = vector.load %arg10[%c0_147, %c0_148] : memref<8x128xf32, #tpu.memory_space<vmem>>, vector<8x128xf32>
      tpu.vector_store %arg10[%c0_147, %c0_148], %403 {strides = array<i32>} : memref<8x128xf32, #tpu.memory_space<vmem>>, vector<8x128xf32>,
    } else {
    }
    %c8_i32 = arith.constant 8 : i32
    %141 = arith.muli %arg1, %c8_i32 : i32
    %c0_71 = arith.constant 0 : index
    %c0_72 = arith.constant 0 : index
    %142 = vector.load %arg10[%c0_71, %c0_72] : memref<8x128xf32, #tpu.memory_space<vmem>>, vector<8x128xf32>
    %c0_i32_73 = arith.constant 0 : i32
    %143 = arith.index_cast %c0_i32_73 : i32 to index
    %c0_74 = arith.constant 0 : index
    %c0_75 = arith.constant 0 : index
    %144 = vector.load %arg9[%143, %c0_74, %c0_75] : memref<8x8x128xf32, #tpu.memory_space<vmem>>, vector<1x8x128xf32>
    %145 = vector.shape_cast %144 : vector<1x8x128xf32> to vector<8x128xf32>
    %c1_i32_76 = arith.constant 1 : i32
    %146 = tpu.dynamic_rotate %142 by %c1_i32_76 dim 1 : vector<8x128xf32>, i32 -> vector<8x128xf32>
    %cst_77 = arith.constant -1.000000e+30 : f32
    %147 = vector.broadcast %cst_77 : f32 to vector<8x128xf32>
    %148 = arith.select %39, %146, %147 : vector<8x128xi1>, vector<8x128xf32>
    %c2_i32_78 = arith.constant 2 : i32
    %149 = tpu.dynamic_rotate %142 by %c2_i32_78 dim 1 : vector<8x128xf32>, i32 -> vector<8x128xf32>
    %cst_79 = arith.constant -1.000000e+30 : f32
    %150 = vector.broadcast %cst_79 : f32 to vector<8x128xf32>
    %151 = arith.select %37, %149, %150 : vector<8x128xi1>, vector<8x128xf32>
    %152 = arith.maximumf %142, %148 : vector<8x128xf32>
    %153 = arith.maximumf %152, %151 : vector<8x128xf32>
    %154 = arith.subf %142, %153 : vector<8x128xf32>
    %155 = math.exp %154 : vector<8x128xf32>
    %156 = arith.subf %148, %153 : vector<8x128xf32>
    %157 = math.exp %156 : vector<8x128xf32>
    %158 = arith.addf %155, %157 : vector<8x128xf32>
    %159 = arith.subf %151, %153 : vector<8x128xf32>
    %160 = math.exp %159 : vector<8x128xf32>
    %161 = arith.addf %158, %160 : vector<8x128xf32>
    %162 = math.log %161 : vector<8x128xf32>
    %163 = arith.addf %153, %162 : vector<8x128xf32>
    %164 = arith.addf %163, %145 : vector<8x128xf32>
    %165 = arith.addi %141, %c0_i32_73 : i32
    %c0_i32_80 = arith.constant 0 : i32
    %166 = arith.cmpi eq, %165, %c0_i32_80 : i32
    %cst_81 = arith.constant -1.000000e+30 : f32
    %167 = vector.broadcast %cst_81 : f32 to vector<8x128xf32>
    %168 = arith.select %48, %145, %167 : vector<8x128xi1>, vector<8x128xf32>
    %169 = arith.select %166, %168, %164 : vector<8x128xf32>
    %170 = vector.broadcast %165 : i32 to vector<8x1xi32>
    %171 = arith.cmpi slt, %170, %0 : vector<8x1xi32>
    %172 = vector.shape_cast %171 : vector<8x1xi1> to vector<8x1xi1>
    %173 = vector.broadcast %172 : vector<8x1xi1> to vector<8x128xi1>
    %174 = arith.select %173, %169, %142 : vector<8x128xi1>, vector<8x128xf32>
    %c1_i32_82 = arith.constant 1 : i32
    %175 = arith.index_cast %c1_i32_82 : i32 to index
    %c0_83 = arith.constant 0 : index
    %c0_84 = arith.constant 0 : index
    %176 = vector.load %arg9[%175, %c0_83, %c0_84] : memref<8x8x128xf32, #tpu.memory_space<vmem>>, vector<1x8x128xf32>
    %177 = vector.shape_cast %176 : vector<1x8x128xf32> to vector<8x128xf32>
    %c1_i32_85 = arith.constant 1 : i32
    %178 = tpu.dynamic_rotate %174 by %c1_i32_85 dim 1 : vector<8x128xf32>, i32 -> vector<8x128xf32>
    %cst_86 = arith.constant -1.000000e+30 : f32
    %179 = vector.broadcast %cst_86 : f32 to vector<8x128xf32>
    %180 = arith.select %39, %178, %179 : vector<8x128xi1>, vector<8x128xf32>
    %c2_i32_87 = arith.constant 2 : i32
    %181 = tpu.dynamic_rotate %174 by %c2_i32_87 dim 1 : vector<8x128xf32>, i32 -> vector<8x128xf32>
    %cst_88 = arith.constant -1.000000e+30 : f32
    %182 = vector.broadcast %cst_88 : f32 to vector<8x128xf32>
    %183 = arith.select %37, %181, %182 : vector<8x128xi1>, vector<8x128xf32>
    %184 = arith.maximumf %174, %180 : vector<8x128xf32>
    %185 = arith.maximumf %184, %183 : vector<8x128xf32>
    %186 = arith.subf %174, %185 : vector<8x128xf32>
    %187 = math.exp %186 : vector<8x128xf32>
    %188 = arith.subf %180, %185 : vector<8x128xf32>
    %189 = math.exp %188 : vector<8x128xf32>
    %190 = arith.addf %187, %189 : vector<8x128xf32>
    %191 = arith.subf %183, %185 : vector<8x128xf32>
    %192 = math.exp %191 : vector<8x128xf32>
    %193 = arith.addf %190, %192 : vector<8x128xf32>
    %194 = math.log %193 : vector<8x128xf32>
    %195 = arith.addf %185, %194 : vector<8x128xf32>
    %196 = arith.addf %195, %177 : vector<8x128xf32>
    %197 = arith.addi %141, %c1_i32_82 : i32
    %c0_i32_89 = arith.constant 0 : i32
    %198 = arith.cmpi eq, %197, %c0_i32_89 : i32
    %cst_90 = arith.constant -1.000000e+30 : f32
    %199 = vector.broadcast %cst_90 : f32 to vector<8x128xf32>
    %200 = arith.select %48, %177, %199 : vector<8x128xi1>, vector<8x128xf32>
    %201 = arith.select %198, %200, %196 : vector<8x128xf32>
    %202 = vector.broadcast %197 : i32 to vector<8x1xi32>
    %203 = arith.cmpi slt, %202, %0 : vector<8x1xi32>
    %204 = vector.shape_cast %203 : vector<8x1xi1> to vector<8x1xi1>
    %205 = vector.broadcast %204 : vector<8x1xi1> to vector<8x128xi1>
    %206 = arith.select %205, %201, %174 : vector<8x128xi1>, vector<8x128xf32>
    %c2_i32_91 = arith.constant 2 : i32
    %207 = arith.index_cast %c2_i32_91 : i32 to index
    %c0_92 = arith.constant 0 : index
    %c0_93 = arith.constant 0 : index
    %208 = vector.load %arg9[%207, %c0_92, %c0_93] : memref<8x8x128xf32, #tpu.memory_space<vmem>>, vector<1x8x128xf32>
    %209 = vector.shape_cast %208 : vector<1x8x128xf32> to vector<8x128xf32>
    %c1_i32_94 = arith.constant 1 : i32
    %210 = tpu.dynamic_rotate %206 by %c1_i32_94 dim 1 : vector<8x128xf32>, i32 -> vector<8x128xf32>
    %cst_95 = arith.constant -1.000000e+30 : f32
    %211 = vector.broadcast %cst_95 : f32 to vector<8x128xf32>
    %212 = arith.select %39, %210, %211 : vector<8x128xi1>, vector<8x128xf32>
    %c2_i32_96 = arith.constant 2 : i32
    %213 = tpu.dynamic_rotate %206 by %c2_i32_96 dim 1 : vector<8x128xf32>, i32 -> vector<8x128xf32>
    %cst_97 = arith.constant -1.000000e+30 : f32
    %214 = vector.broadcast %cst_97 : f32 to vector<8x128xf32>
    %215 = arith.select %37, %213, %214 : vector<8x128xi1>, vector<8x128xf32>
    %216 = arith.maximumf %206, %212 : vector<8x128xf32>
    %217 = arith.maximumf %216, %215 : vector<8x128xf32>
    %218 = arith.subf %206, %217 : vector<8x128xf32>
    %219 = math.exp %218 : vector<8x128xf32>
    %220 = arith.subf %212, %217 : vector<8x128xf32>
    %221 = math.exp %220 : vector<8x128xf32>
    %222 = arith.addf %219, %221 : vector<8x128xf32>
    %223 = arith.subf %215, %217 : vector<8x128xf32>
    %224 = math.exp %223 : vector<8x128xf32>
    %225 = arith.addf %222, %224 : vector<8x128xf32>
    %226 = math.log %225 : vector<8x128xf32>
    %227 = arith.addf %217, %226 : vector<8x128xf32>
    %228 = arith.addf %227, %209 : vector<8x128xf32>
    %229 = arith.addi %141, %c2_i32_91 : i32
    %c0_i32_98 = arith.constant 0 : i32
    %230 = arith.cmpi eq, %229, %c0_i32_98 : i32
    %cst_99 = arith.constant -1.000000e+30 : f32
    %231 = vector.broadcast %cst_99 : f32 to vector<8x128xf32>
    %232 = arith.select %48, %209, %231 : vector<8x128xi1>, vector<8x128xf32>
    %233 = arith.select %230, %232, %228 : vector<8x128xf32>
    %234 = vector.broadcast %229 : i32 to vector<8x1xi32>
    %235 = arith.cmpi slt, %234, %0 : vector<8x1xi32>
    %236 = vector.shape_cast %235 : vector<8x1xi1> to vector<8x1xi1>
    %237 = vector.broadcast %236 : vector<8x1xi1> to vector<8x128xi1>
    %238 = arith.select %237, %233, %206 : vector<8x128xi1>, vector<8x128xf32>
    %c3_i32_100 = arith.constant 3 : i32
    %239 = arith.index_cast %c3_i32_100 : i32 to index
    %c0_101 = arith.constant 0 : index
    %c0_102 = arith.constant 0 : index
    %240 = vector.load %arg9[%239, %c0_101, %c0_102] : memref<8x8x128xf32, #tpu.memory_space<vmem>>, vector<1x8x128xf32>
    %241 = vector.shape_cast %240 : vector<1x8x128xf32> to vector<8x128xf32>
    %c1_i32_103 = arith.constant 1 : i32
    %242 = tpu.dynamic_rotate %238 by %c1_i32_103 dim 1 : vector<8x128xf32>, i32 -> vector<8x128xf32>
    %cst_104 = arith.constant -1.000000e+30 : f32
    %243 = vector.broadcast %cst_104 : f32 to vector<8x128xf32>
    %244 = arith.select %39, %242, %243 : vector<8x128xi1>, vector<8x128xf32>
    %c2_i32_105 = arith.constant 2 : i32
    %245 = tpu.dynamic_rotate %238 by %c2_i32_105 dim 1 : vector<8x128xf32>, i32 -> vector<8x128xf32>
    %cst_106 = arith.constant -1.000000e+30 : f32
    %246 = vector.broadcast %cst_106 : f32 to vector<8x128xf32>
    %247 = arith.select %37, %245, %246 : vector<8x128xi1>, vector<8x128xf32>
    %248 = arith.maximumf %238, %244 : vector<8x128xf32>
    %249 = arith.maximumf %248, %247 : vector<8x128xf32>
    %250 = arith.subf %238, %249 : vector<8x128xf32>
    %251 = math.exp %250 : vector<8x128xf32>
    %252 = arith.subf %244, %249 : vector<8x128xf32>
    %253 = math.exp %252 : vector<8x128xf32>
    %254 = arith.addf %251, %253 : vector<8x128xf32>
    %255 = arith.subf %247, %249 : vector<8x128xf32>
    %256 = math.exp %255 : vector<8x128xf32>
    %257 = arith.addf %254, %256 : vector<8x128xf32>
    %258 = math.log %257 : vector<8x128xf32>
    %259 = arith.addf %249, %258 : vector<8x128xf32>
    %260 = arith.addf %259, %241 : vector<8x128xf32>
    %261 = arith.addi %141, %c3_i32_100 : i32
    %c0_i32_107 = arith.constant 0 : i32
    %262 = arith.cmpi eq, %261, %c0_i32_107 : i32
    %cst_108 = arith.constant -1.000000e+30 : f32
    %263 = vector.broadcast %cst_108 : f32 to vector<8x128xf32>
    %264 = arith.select %48, %241, %263 : vector<8x128xi1>, vector<8x128xf32>
    %265 = arith.select %262, %264, %260 : vector<8x128xf32>
    %266 = vector.broadcast %261 : i32 to vector<8x1xi32>
    %267 = arith.cmpi slt, %266, %0 : vector<8x1xi32>
    %268 = vector.shape_cast %267 : vector<8x1xi1> to vector<8x1xi1>
    %269 = vector.broadcast %268 : vector<8x1xi1> to vector<8x128xi1>
    %270 = arith.select %269, %265, %238 : vector<8x128xi1>, vector<8x128xf32>
    %c4_i32 = arith.constant 4 : i32
    %271 = arith.index_cast %c4_i32 : i32 to index
    %c0_109 = arith.constant 0 : index
    %c0_110 = arith.constant 0 : index
    %272 = vector.load %arg9[%271, %c0_109, %c0_110] : memref<8x8x128xf32, #tpu.memory_space<vmem>>, vector<1x8x128xf32>
    %273 = vector.shape_cast %272 : vector<1x8x128xf32> to vector<8x128xf32>
    %c1_i32_111 = arith.constant 1 : i32
    %274 = tpu.dynamic_rotate %270 by %c1_i32_111 dim 1 : vector<8x128xf32>, i32 -> vector<8x128xf32>
    %cst_112 = arith.constant -1.000000e+30 : f32
    %275 = vector.broadcast %cst_112 : f32 to vector<8x128xf32>
    %276 = arith.select %39, %274, %275 : vector<8x128xi1>, vector<8x128xf32>
    %c2_i32_113 = arith.constant 2 : i32
    %277 = tpu.dynamic_rotate %270 by %c2_i32_113 dim 1 : vector<8x128xf32>, i32 -> vector<8x128xf32>
    %cst_114 = arith.constant -1.000000e+30 : f32
    %278 = vector.broadcast %cst_114 : f32 to vector<8x128xf32>
    %279 = arith.select %37, %277, %278 : vector<8x128xi1>, vector<8x128xf32>
    %280 = arith.maximumf %270, %276 : vector<8x128xf32>
    %281 = arith.maximumf %280, %279 : vector<8x128xf32>
    %282 = arith.subf %270, %281 : vector<8x128xf32>
    %283 = math.exp %282 : vector<8x128xf32>
    %284 = arith.subf %276, %281 : vector<8x128xf32>
    %285 = math.exp %284 : vector<8x128xf32>
    %286 = arith.addf %283, %285 : vector<8x128xf32>
    %287 = arith.subf %279, %281 : vector<8x128xf32>
    %288 = math.exp %287 : vector<8x128xf32>
    %289 = arith.addf %286, %288 : vector<8x128xf32>
    %290 = math.log %289 : vector<8x128xf32>
    %291 = arith.addf %281, %290 : vector<8x128xf32>
    %292 = arith.addf %291, %273 : vector<8x128xf32>
    %293 = arith.addi %141, %c4_i32 : i32
    %c0_i32_115 = arith.constant 0 : i32
    %294 = arith.cmpi eq, %293, %c0_i32_115 : i32
    %cst_116 = arith.constant -1.000000e+30 : f32
    %295 = vector.broadcast %cst_116 : f32 to vector<8x128xf32>
    %296 = arith.select %48, %273, %295 : vector<8x128xi1>, vector<8x128xf32>
    %297 = arith.select %294, %296, %292 : vector<8x128xf32>
    %298 = vector.broadcast %293 : i32 to vector<8x1xi32>
    %299 = arith.cmpi slt, %298, %0 : vector<8x1xi32>
    %300 = vector.shape_cast %299 : vector<8x1xi1> to vector<8x1xi1>
    %301 = vector.broadcast %300 : vector<8x1xi1> to vector<8x128xi1>
    %302 = arith.select %301, %297, %270 : vector<8x128xi1>, vector<8x128xf32>
    %c5_i32 = arith.constant 5 : i32
    %303 = arith.index_cast %c5_i32 : i32 to index
    %c0_117 = arith.constant 0 : index
    %c0_118 = arith.constant 0 : index
    %304 = vector.load %arg9[%303, %c0_117, %c0_118] : memref<8x8x128xf32, #tpu.memory_space<vmem>>, vector<1x8x128xf32>
    %305 = vector.shape_cast %304 : vector<1x8x128xf32> to vector<8x128xf32>
    %c1_i32_119 = arith.constant 1 : i32
    %306 = tpu.dynamic_rotate %302 by %c1_i32_119 dim 1 : vector<8x128xf32>, i32 -> vector<8x128xf32>
    %cst_120 = arith.constant -1.000000e+30 : f32
    %307 = vector.broadcast %cst_120 : f32 to vector<8x128xf32>
    %308 = arith.select %39, %306, %307 : vector<8x128xi1>, vector<8x128xf32>
    %c2_i32_121 = arith.constant 2 : i32
    %309 = tpu.dynamic_rotate %302 by %c2_i32_121 dim 1 : vector<8x128xf32>, i32 -> vector<8x128xf32>
    %cst_122 = arith.constant -1.000000e+30 : f32
    %310 = vector.broadcast %cst_122 : f32 to vector<8x128xf32>
    %311 = arith.select %37, %309, %310 : vector<8x128xi1>, vector<8x128xf32>
    %312 = arith.maximumf %302, %308 : vector<8x128xf32>
    %313 = arith.maximumf %312, %311 : vector<8x128xf32>
    %314 = arith.subf %302, %313 : vector<8x128xf32>
    %315 = math.exp %314 : vector<8x128xf32>
    %316 = arith.subf %308, %313 : vector<8x128xf32>
    %317 = math.exp %316 : vector<8x128xf32>
    %318 = arith.addf %315, %317 : vector<8x128xf32>
    %319 = arith.subf %311, %313 : vector<8x128xf32>
    %320 = math.exp %319 : vector<8x128xf32>
    %321 = arith.addf %318, %320 : vector<8x128xf32>
    %322 = math.log %321 : vector<8x128xf32>
    %323 = arith.addf %313, %322 : vector<8x128xf32>
    %324 = arith.addf %323, %305 : vector<8x128xf32>
    %325 = arith.addi %141, %c5_i32 : i32
    %c0_i32_123 = arith.constant 0 : i32
    %326 = arith.cmpi eq, %325, %c0_i32_123 : i32
    %cst_124 = arith.constant -1.000000e+30 : f32
    %327 = vector.broadcast %cst_124 : f32 to vector<8x128xf32>
    %328 = arith.select %48, %305, %327 : vector<8x128xi1>, vector<8x128xf32>
    %329 = arith.select %326, %328, %324 : vector<8x128xf32>
    %330 = vector.broadcast %325 : i32 to vector<8x1xi32>
    %331 = arith.cmpi slt, %330, %0 : vector<8x1xi32>
    %332 = vector.shape_cast %331 : vector<8x1xi1> to vector<8x1xi1>
    %333 = vector.broadcast %332 : vector<8x1xi1> to vector<8x128xi1>
    %334 = arith.select %333, %329, %302 : vector<8x128xi1>, vector<8x128xf32>
    %c6_i32 = arith.constant 6 : i32
    %335 = arith.index_cast %c6_i32 : i32 to index
    %c0_125 = arith.constant 0 : index
    %c0_126 = arith.constant 0 : index
    %336 = vector.load %arg9[%335, %c0_125, %c0_126] : memref<8x8x128xf32, #tpu.memory_space<vmem>>, vector<1x8x128xf32>
    %337 = vector.shape_cast %336 : vector<1x8x128xf32> to vector<8x128xf32>
    %c1_i32_127 = arith.constant 1 : i32
    %338 = tpu.dynamic_rotate %334 by %c1_i32_127 dim 1 : vector<8x128xf32>, i32 -> vector<8x128xf32>
    %cst_128 = arith.constant -1.000000e+30 : f32
    %339 = vector.broadcast %cst_128 : f32 to vector<8x128xf32>
    %340 = arith.select %39, %338, %339 : vector<8x128xi1>, vector<8x128xf32>
    %c2_i32_129 = arith.constant 2 : i32
    %341 = tpu.dynamic_rotate %334 by %c2_i32_129 dim 1 : vector<8x128xf32>, i32 -> vector<8x128xf32>
    %cst_130 = arith.constant -1.000000e+30 : f32
    %342 = vector.broadcast %cst_130 : f32 to vector<8x128xf32>
    %343 = arith.select %37, %341, %342 : vector<8x128xi1>, vector<8x128xf32>
    %344 = arith.maximumf %334, %340 : vector<8x128xf32>
    %345 = arith.maximumf %344, %343 : vector<8x128xf32>
    %346 = arith.subf %334, %345 : vector<8x128xf32>
    %347 = math.exp %346 : vector<8x128xf32>
    %348 = arith.subf %340, %345 : vector<8x128xf32>
    %349 = math.exp %348 : vector<8x128xf32>
    %350 = arith.addf %347, %349 : vector<8x128xf32>
    %351 = arith.subf %343, %345 : vector<8x128xf32>
    %352 = math.exp %351 : vector<8x128xf32>
    %353 = arith.addf %350, %352 : vector<8x128xf32>
    %354 = math.log %353 : vector<8x128xf32>
    %355 = arith.addf %345, %354 : vector<8x128xf32>
    %356 = arith.addf %355, %337 : vector<8x128xf32>
    %357 = arith.addi %141, %c6_i32 : i32
    %c0_i32_131 = arith.constant 0 : i32
    %358 = arith.cmpi eq, %357, %c0_i32_131 : i32
    %cst_132 = arith.constant -1.000000e+30 : f32
    %359 = vector.broadcast %cst_132 : f32 to vector<8x128xf32>
    %360 = arith.select %48, %337, %359 : vector<8x128xi1>, vector<8x128xf32>
    %361 = arith.select %358, %360, %356 : vector<8x128xf32>
    %362 = vector.broadcast %357 : i32 to vector<8x1xi32>
    %363 = arith.cmpi slt, %362, %0 : vector<8x1xi32>
    %364 = vector.shape_cast %363 : vector<8x1xi1> to vector<8x1xi1>
    %365 = vector.broadcast %364 : vector<8x1xi1> to vector<8x128xi1>
    %366 = arith.select %365, %361, %334 : vector<8x128xi1>, vector<8x128xf32>
    %c7_i32 = arith.constant 7 : i32
    %367 = arith.index_cast %c7_i32 : i32 to index
    %c0_133 = arith.constant 0 : index
    %c0_134 = arith.constant 0 : index
    %368 = vector.load %arg9[%367, %c0_133, %c0_134] : memref<8x8x128xf32, #tpu.memory_space<vmem>>, vector<1x8x128xf32>
    %369 = vector.shape_cast %368 : vector<1x8x128xf32> to vector<8x128xf32>
    %c1_i32_135 = arith.constant 1 : i32
    %370 = tpu.dynamic_rotate %366 by %c1_i32_135 dim 1 : vector<8x128xf32>, i32 -> vector<8x128xf32>
    %cst_136 = arith.constant -1.000000e+30 : f32
    %371 = vector.broadcast %cst_136 : f32 to vector<8x128xf32>
    %372 = arith.select %39, %370, %371 : vector<8x128xi1>, vector<8x128xf32>
    %c2_i32_137 = arith.constant 2 : i32
    %373 = tpu.dynamic_rotate %366 by %c2_i32_137 dim 1 : vector<8x128xf32>, i32 -> vector<8x128xf32>
    %cst_138 = arith.constant -1.000000e+30 : f32
    %374 = vector.broadcast %cst_138 : f32 to vector<8x128xf32>
    %375 = arith.select %37, %373, %374 : vector<8x128xi1>, vector<8x128xf32>
    %376 = arith.maximumf %366, %372 : vector<8x128xf32>
    %377 = arith.maximumf %376, %375 : vector<8x128xf32>
    %378 = arith.subf %366, %377 : vector<8x128xf32>
    %379 = math.exp %378 : vector<8x128xf32>
    %380 = arith.subf %372, %377 : vector<8x128xf32>
    %381 = math.exp %380 : vector<8x128xf32>
    %382 = arith.addf %379, %381 : vector<8x128xf32>
    %383 = arith.subf %375, %377 : vector<8x128xf32>
    %384 = math.exp %383 : vector<8x128xf32>
    %385 = arith.addf %382, %384 : vector<8x128xf32>
    %386 = math.log %385 : vector<8x128xf32>
    %387 = arith.addf %377, %386 : vector<8x128xf32>
    %388 = arith.addf %387, %369 : vector<8x128xf32>
    %389 = arith.addi %141, %c7_i32 : i32
    %c0_i32_139 = arith.constant 0 : i32
    %390 = arith.cmpi eq, %389, %c0_i32_139 : i32
    %cst_140 = arith.constant -1.000000e+30 : f32
    %391 = vector.broadcast %cst_140 : f32 to vector<8x128xf32>
    %392 = arith.select %48, %369, %391 : vector<8x128xi1>, vector<8x128xf32>
    %393 = arith.select %390, %392, %388 : vector<8x128xf32>
    %394 = vector.broadcast %389 : i32 to vector<8x1xi32>
    %395 = arith.cmpi slt, %394, %0 : vector<8x1xi32>
    %396 = vector.shape_cast %395 : vector<8x1xi1> to vector<8x1xi1>
    %397 = vector.broadcast %396 : vector<8x1xi1> to vector<8x128xi1>
    %398 = arith.select %397, %393, %366 : vector<8x128xi1>, vector<8x128xf32>
    %c8_i32_141 = arith.constant 8 : i32
    %c0_142 = arith.constant 0 : index
    %c0_143 = arith.constant 0 : index
    %399 = vector.load %arg10[%c0_142, %c0_143] : memref<8x128xf32, #tpu.memory_space<vmem>>, vector<8x128xf32>
    tpu.vector_store %arg10[%c0_142, %c0_143], %398 {strides = array<i32>} : memref<8x128xf32, #tpu.memory_space<vmem>>, vector<8x128xf32>,
    %c1_i32_144 = arith.constant 1 : i32
    %400 = arith.cmpi eq, %arg1, %c1_i32_144 : i32
    %401 = arith.extui %400 : i1 to i32
    %c0_i32_145 = arith.constant 0 : i32
    %402 = arith.cmpi ne, %401, %c0_i32_145 : i32
    scf.if %402 {
      %c2_i32_146 = arith.constant 2 : i32
      %403 = vector.broadcast %c2_i32_146 : i32 to vector<8x1xi32>
      %404 = arith.muli %403, %1 : vector<8x1xi32>
      %405 = vector.broadcast %404 : vector<8x1xi32> to vector<8x128xi32>
      %406 = arith.cmpi eq, %9, %405 : vector<8x128xi32>
      %cst_147 = arith.constant -1.000000e+30 : f32
      %407 = vector.broadcast %cst_147 : f32 to vector<8x128xf32>
      %408 = arith.select %406, %398, %407 : vector<8x128xi1>, vector<8x128xf32>
      %cst_148 = arith.constant dense<0xFF800000> : vector<8xf32>
      %409 = vector.multi_reduction <maximumf>, %408, %cst_148 [1] : vector<8x128xf32> to vector<8xf32>
      %410 = vector.shape_cast %409 : vector<8xf32> to vector<8x1xf32>
      %c1_i32_149 = arith.constant 1 : i32
      %411 = vector.broadcast %c1_i32_149 : i32 to vector<8x1xi32>
      %412 = arith.subi %404, %411 : vector<8x1xi32>
      %413 = vector.broadcast %412 : vector<8x1xi32> to vector<8x128xi32>
      %414 = arith.cmpi eq, %9, %413 : vector<8x128xi32>
      %c1_i32_150 = arith.constant 1 : i32
      %415 = vector.broadcast %c1_i32_150 : i32 to vector<8x1xi32>
      %416 = arith.cmpi sge, %1, %415 : vector<8x1xi32>
      %417 = vector.broadcast %416 : vector<8x1xi1> to vector<8x128xi1>
      %418 = arith.andi %414, %417 : vector<8x128xi1>
      %cst_151 = arith.constant -1.000000e+30 : f32
      %419 = vector.broadcast %cst_151 : f32 to vector<8x128xf32>
      %420 = arith.select %418, %398, %419 : vector<8x128xi1>, vector<8x128xf32>
      %cst_152 = arith.constant dense<0xFF800000> : vector<8xf32>
      %421 = vector.multi_reduction <maximumf>, %420, %cst_152 [1] : vector<8x128xf32> to vector<8xf32>
      %422 = vector.shape_cast %421 : vector<8xf32> to vector<8x1xf32>
      %423 = arith.maximumf %410, %422 : vector<8x1xf32>
      %424 = arith.subf %410, %423 : vector<8x1xf32>
      %425 = math.exp %424 : vector<8x1xf32>
      %426 = arith.subf %422, %423 : vector<8x1xf32>
      %427 = math.exp %426 : vector<8x1xf32>
      %428 = arith.addf %425, %427 : vector<8x1xf32>
      %429 = math.log %428 : vector<8x1xf32>
      %430 = arith.addf %423, %429 : vector<8x1xf32>
      %cst_153 = arith.constant 0.000000e+00 : f32
      %431 = vector.broadcast %cst_153 : f32 to vector<8x1xf32>
      %432 = arith.subf %431, %430 : vector<8x1xf32>
      %cst_154 = arith.constant 1.000000e+29 : f32
      %433 = vector.broadcast %cst_154 : f32 to vector<8x1xf32>
      %434 = arith.cmpf ogt, %432, %433 : vector<8x1xf32>
      %cst_155 = arith.constant 0.000000e+00 : f32
      %435 = vector.broadcast %cst_155 : f32 to vector<8x1xf32>
      %436 = arith.select %434, %435, %432 : vector<8x1xi1>, vector<8x1xf32>
      %c1_i32_156 = arith.constant 1 : i32
      %437 = vector.broadcast %c1_i32_156 : i32 to vector<8x1xi32>
      %438 = arith.maxsi %1, %437 : vector<8x1xi32>
      %439 = arith.sitofp %438 : vector<8x1xi32> to vector<8x1xf32>
      %440 = arith.divf %436, %439 : vector<8x1xf32>
      %441 = vector.shape_cast %440 : vector<8x1xf32> to vector<8x1xf32>
      %442 = vector.broadcast %441 : vector<8x1xf32> to vector<8x128xf32>
      %c0_157 = arith.constant 0 : index
      %c0_158 = arith.constant 0 : index
      %443 = vector.load %arg8[%c0_157, %c0_158] : memref<8x128xf32, #tpu.memory_space<vmem>>, vector<8x128xf32>
      tpu.vector_store %arg8[%c0_157, %c0_158], %442 {strides = array<i32>} : memref<8x128xf32, #tpu.memory_space<vmem>>, vector<8x128xf32>,
    } else {
    }
    return
  }
  func.func @transform_0(%arg0: i32, %arg1: i32) -> (i32, i32) {
    %c0_i32 = arith.constant 0 : i32
    %c0_i32_0 = arith.constant 0 : i32
    return %arg0, %c0_i32 : i32, i32
  }
  func.func @transform_1(%arg0: i32, %arg1: i32) -> (i32, i32) {
    %c0_i32 = arith.constant 0 : i32
    %c0_i32_0 = arith.constant 0 : i32
    return %arg0, %c0_i32 : i32, i32
  }
  func.func @transform_2(%arg0: i32, %arg1: i32) -> (i32, i32) {
    %c0_i32 = arith.constant 0 : i32
    %c0_i32_0 = arith.constant 0 : i32
    return %arg0, %c0_i32 : i32, i32
  }
  func.func @transform_3(%arg0: i32, %arg1: i32) -> (i32, i32) {
    %c0_i32 = arith.constant 0 : i32
    %c0_i32_0 = arith.constant 0 : i32
    %c0_i32_1 = arith.constant 0 : i32
    return %c0_i32, %c0_i32_0 : i32, i32
  }
  func.func @transform_4(%arg0: i32, %arg1: i32) -> (i32, i32) {
    %c0_i32 = arith.constant 0 : i32
    %c0_i32_0 = arith.constant 0 : i32
    %c0_i32_1 = arith.constant 0 : i32
    return %c0_i32, %c0_i32_0 : i32, i32
  }
  func.func @transform_5(%arg0: i32, %arg1: i32) -> (i32, i32, i32) {
    %c0_i32 = arith.constant 0 : i32
    %c0_i32_0 = arith.constant 0 : i32
    return %arg0, %arg1, %c0_i32 : i32, i32, i32
  }
  func.func @transform_6(%arg0: i32, %arg1: i32) -> (i32, i32) {
    %c0_i32 = arith.constant 0 : i32
    %c0_i32_0 = arith.constant 0 : i32
    return %arg0, %c0_i32 : i32, i32
  }
}

</mosaic_0001>

<llo_original>
// kernel: tpu_custom_call.1
$region0: #{tpu_custom_call.1}
  #allocation0 [shape = 'u32[]', space=smem, size = 0x4, offset = 0x4, fixed_abs, tag = 'smem constant byte address 0x4 - core index']
  #allocation1 [shape = 'u32[72,128]{1,0:T(1,128)}', space=vmem, size = 0x9000, scoped, tag = 'internal scratch']
  #allocation2 [shape = 'f32[8,8,128]{2,1,0:T(8,128)}', space=vmem, size = 0x8000, scoped, tag = 'scratch operand']
  #allocation3 [shape = 'f32[8,128]{1,0:T(8,128)}', space=vmem, size = 0x1000, scoped, tag = 'scratch operand']
  %s0 = inlined_call_operand.vmem [shape: s32[8,1], index: 0, kind: input, shape index: {}]
  %s1 = inlined_call_operand.vmem [shape: s32[8,1], index: 1, kind: input, shape index: {}]
  %s2 = inlined_call_operand.vmem [shape: f32[8,8], index: 2, kind: input, shape index: {}]
  %s3 = inlined_call_operand.vmem [shape: f32[8,128], index: 3, kind: input, shape index: {}]
  %s4 = inlined_call_operand.hbm [shape: f32[8,128], index: 4, kind: input, shape index: {}]
  %s5 = inlined_call_operand.hbm [shape: f32[8,16,32], index: 5, kind: input, shape index: {}]
  %s6 = inlined_call_operand.hbm [shape: f32[8,128], index: 6, kind: output, shape index: {}]
  %s7 = sld [smem:[#allocation0]]
  $region73: #{tpu_custom_call.1} parent=0
    _
  %s9 = ssub.s32 1, %s7
  %s10 = scalar_select 0, %s9, %s7
  $region1: #{tpu_custom_call.1} parent=0
    #allocation4 [shape = 'u8[4096]{0}', space=vmem, size = 0x1000, scoped, tag = 'input window, operand 4, single buffered']
    #allocation5 [shape = 's32[2]{0}', space=sflag, size = 0x8, scoped, tag = 'scoped memory for tpu_custom_call.1']
    #allocation6 [shape = 's32[2]{0}', space=sflag, size = 0x8, scoped, tag = 'scoped memory for tpu_custom_call.1']
    #allocation7 [shape = 'u8[65536]{0}', space=vmem, size = 0x10000, scoped, tag = 'input window, operand 5']
    #allocation8 [shape = 's32[2]{0}', space=sflag, size = 0x8, scoped, tag = 'scoped memory for tpu_custom_call.1']
    #allocation9 [shape = 'u8[4096]{0}', space=vmem, size = 0x1000, scoped, tag = 'output window, operand 0, single buffered']
    %11 = vsyncpa [#allocation5], 0
    %12 = vsyncpa [#allocation8], 0
    %s13 = scalar_lea.sflag [#allocation8], 1
    %14 = vsyncpa %s13, 0
    %15 = vsyncpa [#allocation6], 0
    loop: start=0, step=1, limit=4
    $region2: #{tpu_custom_call.1} parent=1 // loop_pre_header
      _
    $region3: #{tpu_custom_call.1} parent=1 // loop_header
      %s17 = sphi 0, %s21
      %p18 = scmp.ge.s32.totalorder %s17, 4
      %s24 = sphi 0, %s36
      %s25 = sphi 0, %s32
      %s26 = sphi 0, %s24
      %s27 = sphi 0, %s25
      %s28 = sphi 0, %s26
      %s29 = sphi 0, %s27
      %s39 = sphi 0, %s41
      %s42 = sphi 0, %s39
      %s43 = sphi 0, %s42
      %s59 = sphi 0, %s43
      %s65 = sphi 0, %s67
      %s68 = sphi 0, %s65
      %s69 = sphi 0, %s68
      %s85 = sphi 0, %s69
      %s91 = sphi 0, %s93
      %s94 = sphi 0, %s91
      %s95 = sphi 0, %s94
      %s111 = sphi 0, %s95
      %s115 = sphi 0, %s115
      %s117 = sphi 0, %s115
      %s118 = sphi 0, %s117
      %s132 = sphi 0, %s118
      %s136 = sphi 0, %s136
      %s138 = sphi 0, %s136
      %s139 = sphi 0, %s138
      %s153 = sphi 0, %s139
      %s161 = sphi 0, %s163
      %s164 = sphi 0, %s161
      %s165 = sphi 0, %s164
      %s181 = sphi 0, %s165
      %s187 = sphi 0, %s189
      %s190 = sphi 0, %s187
      %s191 = sphi 0, %s190
      %s207 = sphi 0, %s191
    $region4: #{tpu_custom_call.1} parent=1 // loop_header_branch
      %20 = sbr.rel (%p18) target = $region8
    $region5: #{tpu_custom_call.1} parent=1 // loop_body
      %s22 = ssub.s32 %s17, 1
      %s23 = ssub.s32 %s17, 2
      %s30 = sadd.s32 1, %s25
      %p31 = scmp.ge.s32.totalorder %s30, 2
      %s32 = scalar_select %p31, 0, %s30
      %s33 = sadd.s32 1, %s24
      %s34 = scalar_select %p31, %s33, %s24
      %p35 = scmp.ge.s32.totalorder %s34, 1
      %s36 = scalar_select %p35, 0, %s34
      %s37 = ssub.s32 %s24, %s36
      %p38 = scmp.eq.s32.totalorder %s37, 0
      %s40 = sadd.s32 %s39, 1
      %s41 = scalar_select %p38, %s39, %s40
      %p44 = pneg %p38
      %p45 = scmp.eq.s32.totalorder %s17, 1
      %p46 = por %p44, %p45
      %p47 = scmp.ne.s32.totalorder %s39, %s42
      %p48 = scmp.eq.s32.totalorder %s17, 0
      %p49 = por %p47, %p48
      %p50 = scmp.ne.s32.totalorder %s39, %s42
      %p51 = scmp.eq.s32.totalorder %s22, 1
      %p52 = por %p50, %p51
      %p53 = scmp.ne.s32.totalorder %s42, %s43
      %p54 = scmp.eq.s32.totalorder %s22, 0
      %p55 = por %p53, %p54
      %p56 = scmp.ne.s32.totalorder %s42, %s43
      %p57 = scmp.eq.s32.totalorder %s23, 1
      %p58 = por %p56, %p57
      %p60 = scmp.ne.s32.totalorder %s43, %s59
      %p61 = scmp.eq.s32.totalorder %s23, 0
      %p62 = por %p60, %p61
      %s63 = ssub.s32 %s24, %s36
      %p64 = scmp.eq.s32.totalorder %s63, 0
      %s66 = sadd.s32 %s65, 1
      %s67 = scalar_select %p64, %s65, %s66
      %p70 = pneg %p64
      %p71 = scmp.eq.s32.totalorder %s17, 1
      %p72 = por %p70, %p71
      %p73 = scmp.ne.s32.totalorder %s65, %s68
      %p74 = scmp.eq.s32.totalorder %s17, 0
      %p75 = por %p73, %p74
      %p76 = scmp.ne.s32.totalorder %s65, %s68
      %p77 = scmp.eq.s32.totalorder %s22, 1
      %p78 = por %p76, %p77
      %p79 = scmp.ne.s32.totalorder %s68, %s69
      %p80 = scmp.eq.s32.totalorder %s22, 0
      %p81 = por %p79, %p80
      %p82 = scmp.ne.s32.totalorder %s68, %s69
      %p83 = scmp.eq.s32.totalorder %s23, 1
      %p84 = por %p82, %p83
      %p86 = scmp.ne.s32.totalorder %s69, %s85
      %p87 = scmp.eq.s32.totalorder %s23, 0
      %p88 = por %p86, %p87
      %s89 = ssub.s32 %s24, %s36
      %p90 = scmp.eq.s32.totalorder %s89, 0
      %s92 = sadd.s32 %s91, 1
      %s93 = scalar_select %p90, %s91, %s92
      %p96 = pneg %p90
      %p97 = scmp.eq.s32.totalorder %s17, 1
      %p98 = por %p96, %p97
      %p99 = scmp.ne.s32.totalorder %s91, %s94
      %p100 = scmp.eq.s32.totalorder %s17, 0
      %p101 = por %p99, %p100
      %p102 = scmp.ne.s32.totalorder %s91, %s94
      %p103 = scmp.eq.s32.totalorder %s22, 1
      %p104 = por %p102, %p103
      %p105 = scmp.ne.s32.totalorder %s94, %s95
      %p106 = scmp.eq.s32.totalorder %s22, 0
      %p107 = por %p105, %p106
      %p108 = scmp.ne.s32.totalorder %s94, %s95
      %p109 = scmp.eq.s32.totalorder %s23, 1
      %p110 = por %p108, %p109
      %p112 = scmp.ne.s32.totalorder %s95, %s111
      %p113 = scmp.eq.s32.totalorder %s23, 0
      %p114 = por %p112, %p113
      %s116 = sadd.s32 %s115, 1
      %p119 = scmp.eq.s32.totalorder %s17, 1
      %p120 = scmp.ne.s32.totalorder %s115, %s117
      %p121 = scmp.eq.s32.totalorder %s17, 0
      %p122 = por %p120, %p121
      %p123 = scmp.ne.s32.totalorder %s115, %s117
      %p124 = scmp.eq.s32.totalorder %s22, 1
      %p125 = por %p123, %p124
      %p126 = scmp.ne.s32.totalorder %s117, %s118
      %p127 = scmp.eq.s32.totalorder %s22, 0
      %p128 = por %p126, %p127
      %p129 = scmp.ne.s32.totalorder %s117, %s118
      %p130 = scmp.eq.s32.totalorder %s23, 1
      %p131 = por %p129, %p130
      %p133 = scmp.ne.s32.totalorder %s118, %s132
      %p134 = scmp.eq.s32.totalorder %s23, 0
      %p135 = por %p133, %p134
      %s137 = sadd.s32 %s136, 1
      %p140 = scmp.eq.s32.totalorder %s17, 1
      %p141 = scmp.ne.s32.totalorder %s136, %s138
      %p142 = scmp.eq.s32.totalorder %s17, 0
      %p143 = por %p141, %p142
      %p144 = scmp.ne.s32.totalorder %s136, %s138
      %p145 = scmp.eq.s32.totalorder %s22, 1
      %p146 = por %p144, %p145
      %p147 = scmp.ne.s32.totalorder %s138, %s139
      %p148 = scmp.eq.s32.totalorder %s22, 0
      %p149 = por %p147, %p148
      %p150 = scmp.ne.s32.totalorder %s138, %s139
      %p151 = scmp.eq.s32.totalorder %s23, 1
      %p152 = por %p150, %p151
      %p154 = scmp.ne.s32.totalorder %s139, %s153
      %p155 = scmp.eq.s32.totalorder %s23, 0
      %p156 = por %p154, %p155
      %s157 = ssub.s32 %s24, %s36
      %s158 = ssub.s32 %s25, %s32
      %s159 = sor.u32 %s157, %s158
      %p160 = scmp.eq.s32.totalorder %s159, 0
      %s162 = sadd.s32 %s161, 1
      %s163 = scalar_select %p160, %s161, %s162
      %p166 = pneg %p160
      %p167 = scmp.eq.s32.totalorder %s17, 1
      %p168 = por %p166, %p167
      %p169 = scmp.ne.s32.totalorder %s161, %s164
      %p170 = scmp.eq.s32.totalorder %s17, 0
      %p171 = por %p169, %p170
      %p172 = scmp.ne.s32.totalorder %s161, %s164
      %p173 = scmp.eq.s32.totalorder %s22, 1
      %p174 = por %p172, %p173
      %p175 = scmp.ne.s32.totalorder %s164, %s165
      %p176 = scmp.eq.s32.totalorder %s22, 0
      %p177 = por %p175, %p176
      %p178 = scmp.ne.s32.totalorder %s164, %s165
      %p179 = scmp.eq.s32.totalorder %s23, 1
      %p180 = por %p178, %p179
      %p182 = scmp.ne.s32.totalorder %s165, %s181
      %p183 = scmp.eq.s32.totalorder %s23, 0
      %p184 = por %p182, %p183
      %s185 = ssub.s32 %s24, %s36
      %p186 = scmp.eq.s32.totalorder %s185, 0
      %s188 = sadd.s32 %s187, 1
      %s189 = scalar_select %p186, %s187, %s188
      %p192 = pneg %p186
      %p193 = scmp.eq.s32.totalorder %s17, 1
      %p194 = por %p192, %p193
      %p195 = scmp.ne.s32.totalorder %s187, %s190
      %p196 = scmp.eq.s32.totalorder %s17, 0
      %p197 = por %p195, %p196
      %p198 = scmp.ne.s32.totalorder %s187, %s190
      %p199 = scmp.eq.s32.totalorder %s22, 1
      %p200 = por %p198, %p199
      %p201 = scmp.ne.s32.totalorder %s190, %s191
      %p202 = scmp.eq.s32.totalorder %s22, 0
      %p203 = por %p201, %p202
      %p204 = scmp.ne.s32.totalorder %s190, %s191
      %p205 = scmp.eq.s32.totalorder %s23, 1
      %p206 = por %p204, %p205
      %p208 = scmp.ne.s32.totalorder %s191, %s207
      %p209 = scmp.eq.s32.totalorder %s23, 0
      %p210 = por %p208, %p209
      %p211 = scmp.le.s32.totalorder 1, %s17
      %p212 = scmp.lt.s32.totalorder %s17, 3
      %p213 = pnand %p211, %p212
      %p214 = pneg %p213
      // Predicated region
      $region9: #{tpu_custom_call.1} parent=5 // pred_check
        _
      $region10: #{tpu_custom_call.1} parent=5 // pred_check_branch
        %216 = sbr.rel (%p213) target = $region12
      $region11: #{tpu_custom_call.1} parent=5 // pred_region
        %s217 = ssub.s32 %s17, 1
        // Predicated region
        $region13: #{tpu_custom_call.1} parent=11 // pred_check
          %p218 = pneg %p55
        $region14: #{tpu_custom_call.1} parent=11 // pred_check_branch
          %220 = sbr.rel (%p218) target = $region16
        $region15: #{tpu_custom_call.1} parent=11 // pred_region
          %p221 = scmp.lt.s32.totalorder %s26, 0
          %s222 = scalar_select %p221, %s26, 0
          %s223 = smul.addr %s222, 8
          %s224 = scalar_lea.vmem %s0, %s223
        $region16: #{tpu_custom_call.1} parent=11 // pred_fallthru
          _
        // Predicated region
        $region17: #{tpu_custom_call.1} parent=11 // pred_check
          %p225 = pneg %p81
        $region18: #{tpu_custom_call.1} parent=11 // pred_check_branch
          %227 = sbr.rel (%p225) target = $region20
        $region19: #{tpu_custom_call.1} parent=11 // pred_region
          %p228 = scmp.lt.s32.totalorder %s26, 0
          %s229 = scalar_select %p228, %s26, 0
          %s230 = smul.addr %s229, 8
          %s231 = scalar_lea.vmem %s1, %s230
        $region20: #{tpu_custom_call.1} parent=11 // pred_fallthru
          _
        // Predicated region
        $region21: #{tpu_custom_call.1} parent=11 // pred_check
          %p232 = pneg %p107
        $region22: #{tpu_custom_call.1} parent=11 // pred_check_branch
          %234 = sbr.rel (%p232) target = $region24
        $region23: #{tpu_custom_call.1} parent=11 // pred_region
          %p235 = scmp.lt.s32.totalorder %s26, 0
          %s236 = scalar_select %p235, %s26, 0
          %s237 = smul.addr %s236, 8
          %s238 = scalar_lea.vmem %s2, %s237
        $region24: #{tpu_custom_call.1} parent=11 // pred_fallthru
          _
        // Predicated region
        $region25: #{tpu_custom_call.1} parent=11 // pred_check
          %p239 = pneg %p128
        $region26: #{tpu_custom_call.1} parent=11 // pred_check_branch
          %241 = sbr.rel (%p239) target = $region28
        $region27: #{tpu_custom_call.1} parent=11 // pred_region
          _
        $region28: #{tpu_custom_call.1} parent=11 // pred_fallthru
          _
        // Predicated region
        $region29: #{tpu_custom_call.1} parent=11 // pred_check
          %p242 = pneg %p149
        $region30: #{tpu_custom_call.1} parent=11 // pred_check_branch
          %244 = sbr.rel (%p242) target = $region32
        $region31: #{tpu_custom_call.1} parent=11 // pred_region
          %246 = vsyncadd [#allocation5], 0
          %s248 = sshll.u32 %s4, 4
          %s249 = int_to_ptr.hbm [resolvable:$true] %s248
          %s250 = sshll.u32 [#allocation4], 4
          %s251 = int_to_ptr.vmem [resolvable:$true] %s250
          %253 = dma.hbm_to_vmem [thread:$0]  %s249, 128, %s251, [#allocation5]
        $region32: #{tpu_custom_call.1} parent=11 // pred_fallthru
          _
      $region12: #{tpu_custom_call.1} parent=5 // pred_fallthru
        _
      %p254 = scmp.lt.s32.totalorder %s17, 2
      // Predicated region
      $region33: #{tpu_custom_call.1} parent=5 // pred_check
        %p255 = pneg %p254
      $region34: #{tpu_custom_call.1} parent=5 // pred_check_branch
        %257 = sbr.rel (%p255) target = $region36
      $region35: #{tpu_custom_call.1} parent=5 // pred_region
        // Predicated region
        $region37: #{tpu_custom_call.1} parent=35 // pred_check
          %p258 = pneg %p171
        $region38: #{tpu_custom_call.1} parent=35 // pred_check_branch
          %260 = sbr.rel (%p258) target = $region40
        $region39: #{tpu_custom_call.1} parent=35 // pred_region
          %s261 = sand.u32 %s161, 1
          %s262 = scalar_lea.sflag [#allocation8], %s261
          %s263 = sand.u32 %s161, 1
          %s264 = smul.addr %s263, 64
          %s265 = scalar_lea.vmem [#allocation7], %s264
          %s266 = smul.u32 8, %s24
          %268 = vsyncadd %s262, 0
          %s269 = smul.addr %s266, 2
          %s270 = sadd.s32 %s25, %s269
          %s271 = smul.addr %s270, 8
          %s272 = scalar_lea.hbm %s5, %s271
          %s273 = sshll.u32 %s272, 4
          %s274 = int_to_ptr.hbm [resolvable:$true] %s273
          %s275 = sshll.u32 %s265, 4
          %s276 = int_to_ptr.vmem [resolvable:$true] %s275
          %281 = dma.hbm_to_vmem [thread:$0]  %s274, 1024, %s276, %s262, 256, 128, 8
        $region40: #{tpu_custom_call.1} parent=35 // pred_fallthru
          _
      $region36: #{tpu_custom_call.1} parent=5 // pred_fallthru
        _
      %p282 = scmp.le.s32.totalorder 1, %s17
      %p283 = scmp.lt.s32.totalorder %s17, 3
      %p284 = pnand %p282, %p283
      %p285 = pneg %p284
      // Predicated region
      $region41: #{tpu_custom_call.1} parent=5 // pred_check
        _
      $region42: #{tpu_custom_call.1} parent=5 // pred_check_branch
        %287 = sbr.rel (%p284) target = $region44
      $region43: #{tpu_custom_call.1} parent=5 // pred_region
        %s288 = ssub.s32 %s17, 1
        // Predicated region
        $region45: #{tpu_custom_call.1} parent=43 // pred_check
          %p289 = pneg %p149
        $region46: #{tpu_custom_call.1} parent=43 // pred_check_branch
          %291 = sbr.rel (%p289) target = $region48
        $region47: #{tpu_custom_call.1} parent=43 // pred_region
          %293 = dma.done [#allocation5], 128
        $region48: #{tpu_custom_call.1} parent=43 // pred_fallthru
          _
        %s294 = sand.u32 %s164, 1
        %s295 = scalar_lea.sflag [#allocation8], %s294
        %s296 = sand.u32 %s164, 1
        %s297 = smul.addr %s296, 64
        %s298 = scalar_lea.vmem [#allocation7], %s297
        // Predicated region
        $region49: #{tpu_custom_call.1} parent=43 // pred_check
          %p299 = pneg %p177
        $region50: #{tpu_custom_call.1} parent=43 // pred_check_branch
          %301 = sbr.rel (%p299) target = $region52
        $region51: #{tpu_custom_call.1} parent=43 // pred_region
          %303 = dma.done %s295, 1024
        $region52: #{tpu_custom_call.1} parent=43 // pred_fallthru
          _
        %p304 = scmp.lt.s32.totalorder %s26, 0
        %s305 = scalar_select %p304, %s26, 0
        %s306 = smul.addr %s305, 8
        %s307 = scalar_lea.vmem %s0, %s306
        %p308 = pneg %p55
        %p309 = pneg %p52
        %p310 = scmp.lt.s32.totalorder %s26, 0
        %s311 = scalar_select %p310, %s26, 0
        %s312 = smul.addr %s311, 8
        %s313 = scalar_lea.vmem %s1, %s312
        %p314 = pneg %p81
        %p315 = pneg %p78
        %p316 = scmp.lt.s32.totalorder %s26, 0
        %s317 = scalar_select %p316, %s26, 0
        %s318 = smul.addr %s317, 8
        %s319 = scalar_lea.vmem %s2, %s318
        %p320 = pneg %p107
        %p321 = pneg %p104
        %p322 = pneg %p128
        %p323 = pneg %p125
        %p324 = pneg %p149
        %p325 = pneg %p146
        %s326 = sand.u32 %s164, 1
        %s327 = scalar_lea.sflag [#allocation8], %s326
        %s328 = sand.u32 %s164, 1
        %s329 = smul.addr %s328, 64
        %s330 = scalar_lea.vmem [#allocation7], %s329
        %p331 = pneg %p177
        %p332 = pneg %p174
        %p333 = pneg %p203
        %p334 = pneg %p200
        %p335 = scmp.lt.s32.totalorder %s26, 0
        %s336 = scalar_select %p335, %s26, 0
        %s337 = smul.addr %s336, 8
        %s338 = scalar_lea.vmem %s0, %s337
        %p339 = scmp.lt.s32.totalorder %s26, 0
        %s340 = scalar_select %p339, %s26, 0
        %s341 = smul.addr %s340, 8
        %s342 = scalar_lea.vmem %s1, %s341
        %p343 = scmp.lt.s32.totalorder %s26, 0
        %s344 = scalar_select %p343, %s26, 0
        %s345 = smul.addr %s344, 8
        %s346 = scalar_lea.vmem %s2, %s345
        %s347 = smul.u32 8, %s26
        %v348 = vld [vmem:[%s338] sm:$0xff]
        %v349 = vld [vmem:[%s342] sm:$0xff]
        %v350 = vld [vmem:[%s346] sm:$0xff]
        %v351 = vld [vmem:[%s3] sm:$0xff]
        %vm352 = vcmask 64512
        %v354 = vsel %vm352, %v350, 0
        %356 = vmatpush.msra.mxu0 0.0
        %357 = vmatpush.msra.mxu0 0.0
        %358 = vmatpush.msra.mxu0 0.0
        %359 = vmatpush.msra.mxu0 0.0
        %360 = vmatpush.msra.mxu0 0.0
        %361 = vmatpush.msra.mxu0 0.0
        %362 = vmatpush.msra.mxu0 0.0
        %363 = vmatpush.msra.mxu0 0.0
        %364 = vmatpush.msra.mxu0 0.0
        %365 = vmatpush.msra.mxu0 0.0
        %366 = vmatpush.msra.mxu0 0.0
        %367 = vmatpush.msra.mxu0 0.0
        %368 = vmatpush.msra.mxu0 0.0
        %369 = vmatpush.msra.mxu0 0.0
        %370 = vmatpush.msra.mxu0 0.0
        %371 = vmatpush.msra.mxu0 %v351
        %372 = vmatmul.f32.gmra.mxu0 %v354
        %v373 = vpop.f32.mrf.mxu0
        %v374 = vadd.f32 0.0, %v373
        %375 = vdwg.mxu0
        %v376 = vcvt.f32.s32.to.zero.pseudo %v374
        %v377 = vld [vmem:[#allocation4] sm:$0xff]
        %378 = vmatpush.msra.mxu0 0.0
        %379 = vmatpush.msra.mxu0 0.0
        %380 = vmatpush.msra.mxu0 0.0
        %381 = vmatpush.msra.mxu0 0.0
        %382 = vmatpush.msra.mxu0 0.0
        %383 = vmatpush.msra.mxu0 0.0
        %384 = vmatpush.msra.mxu0 0.0
        %385 = vmatpush.msra.mxu0 0.0
        %386 = vmatpush.msra.mxu0 0.0
        %387 = vmatpush.msra.mxu0 0.0
        %388 = vmatpush.msra.mxu0 0.0
        %389 = vmatpush.msra.mxu0 0.0
        %390 = vmatpush.msra.mxu0 0.0
        %391 = vmatpush.msra.mxu0 0.0
        %392 = vmatpush.msra.mxu0 0.0
        %393 = vmatpush.msra.mxu0 %v377
        %394 = vmatmul.f32.gmra.mxu0 %v354
        %v395 = vpop.f32.mrf.mxu0
        %v396 = vadd.f32 0.0, %v395
        %397 = vdwg.mxu0
        %v398 = vcvt.f32.s32.to.zero.pseudo %v396
        %v399 = vlaneseq
        %v400 = vand.u32 %v399, 127
        %vm401 = vcmp.lt.s32.totalorder %v400, 0
        %v402 = vsub.s32 0, %v400
        %v403 = vsel %vm401, %v402, %v400
        %v404 = vshrl.u32 %v403, 1
        %v405 = vand.u32 %v403, 1
        %v406 = vsub.s32 0, %v405
        %v407 = vsel %vm401, %v406, %v405
        %vm408 = vcmp.ne.s32.totalorder %v407, 0
        %vm409 = vcmp.lt.s32.totalorder %v407, 0
        %vm410 = vmand %vm409, %vm408
        %v411 = vadd.s32 %v407, 2
        %v412 = vsel %vm410, %v411, %v407
        %vm413 = vcmp.eq.s32.totalorder %v412, 1
        %v414 = vsel %vm413, %v376, 0
        %vm415 = vcmp.ge.s32.totalorder %v400, 3
        %vm416 = vmand %vm413, %vm415
        %vm417 = vcmp.ne.s32.totalorder %v376, 0
        %vm418 = vmand %vm416, %vm417
        %vm419 = vcmp.ne.s32.totalorder %v376, %v398
        %vm420 = vmand %vm418, %vm419
        %vm421 = vcmp.ge.s32.totalorder %v400, 1
        %vm422 = vcmp.eq.s32.totalorder %v400, 0
        %vm423 = vcmp.eq.s32.totalorder %v400, 1
        %vm424 = vcmp.ge.s32.totalorder %v349, 1
        %v425 = vsel %vm424, 1, 0
        %426 = vset.pattern.permute.xlu0 0
        %427 = vperm.xlu0 %426, %v425
        %v428 = vpop.permute.xlu0 %427
        %vm429 = vcmp.eq.s32.totalorder %v428, 1
        %vm430 = vmand %vm423, %vm429
        %vm431 = vmor %vm422, %vm430
        %v432 = vlaneseq
        %v433 = vshrl.u32 %v432, 7
        %v434 = vadd.s32 %v433, 8
        %v435 = vadd.s32 %v433, 16
        %v436 = vadd.s32 %v433, 24
        %v437 = vperm.slane %v414, 0
        %vm438 = vcmp.eq.s32.totalorder %v433, %v437
        %vm439 = vcmp.eq.s32.totalorder %v434, %v437
        %vm440 = vcmp.eq.s32.totalorder %v435, %v437
        %vm441 = vcmp.eq.s32.totalorder %v436, %v437
        %v442 = vsel %vm438, 1, 0
        %v443 = vsel %vm439, 1, 0
        %v444 = vsel %vm440, 1, 0
        %v445 = vsel %vm441, 1, 0
        %v446 = vcvt.s32.f32 %v442
        %v447 = vcvt.s32.f32 %v443
        %v448 = vcvt.s32.f32 %v444
        %v449 = vcvt.s32.f32 %v445
        %v450 = vld [vmem:[%s298] sm:$0xff]
        %vm451 = vcmask 261120
        %v453 = vsel %vm451, %v450, 0
        %455 = vmatpush.msra.mxu0 0.0
        %456 = vmatpush.msra.mxu0 0.0
        %457 = vmatpush.msra.mxu0 0.0
        %458 = vmatpush.msra.mxu0 0.0
        %459 = vmatpush.msra.mxu0 0.0
        %460 = vmatpush.msra.mxu0 0.0
        %461 = vmatpush.msra.mxu0 0.0
        %462 = vmatpush.msra.mxu0 0.0
        %463 = vmatpush.msra.mxu0 0.0
        %464 = vmatpush.msra.mxu0 0.0
        %465 = vmatpush.msra.mxu0 0.0
        %466 = vmatpush.msra.mxu0 0.0
        %467 = vmatpush.msra.mxu0 %v449
        %468 = vmatpush.msra.mxu0 %v448
        %469 = vmatpush.msra.mxu0 %v447
        %470 = vmatpush.msra.mxu0 %v446
        %471 = vmatmul.f32.gmra.mxu0 %v453
        %v472 = vpop.f32.mrf.mxu0
        %v473 = vadd.f32 0.0, %v472
        %474 = vdwg.mxu0
        %v476 = vrot.slane %v473, 1
        %v477 = vrot.slane %v473, 2
        %v478 = vrot.slane %v473, 3
        %v479 = vrot.slane %v473, 4
        %v480 = vrot.slane %v473, 5
        %v481 = vrot.slane %v473, 6
        %v482 = vrot.slane %v473, 7
        %490 = vst [vmem:[#allocation2] sm:$0x1] %v473
        %491 = vst [vmem:[#allocation2 + $0x8] sm:$0x1] %v476
        %492 = vst [vmem:[#allocation2 + $0x10] sm:$0x1] %v477
        %493 = vst [vmem:[#allocation2 + $0x18] sm:$0x1] %v478
        %494 = vst [vmem:[#allocation2 + $0x20] sm:$0x1] %v479
        %495 = vst [vmem:[#allocation2 + $0x28] sm:$0x1] %v480
        %496 = vst [vmem:[#allocation2 + $0x30] sm:$0x1] %v481
        %497 = vst [vmem:[#allocation2 + $0x38] sm:$0x1] %v482
        %v498 = vperm.slane %v414, 1
        %vm499 = vcmp.eq.s32.totalorder %v433, %v498
        %vm500 = vcmp.eq.s32.totalorder %v434, %v498
        %vm501 = vcmp.eq.s32.totalorder %v435, %v498
        %vm502 = vcmp.eq.s32.totalorder %v436, %v498
        %v503 = vsel %vm499, 1, 0
        %v504 = vsel %vm500, 1, 0
        %v505 = vsel %vm501, 1, 0
        %v506 = vsel %vm502, 1, 0
        %v507 = vcvt.s32.f32 %v503
        %v508 = vcvt.s32.f32 %v504
        %v509 = vcvt.s32.f32 %v505
        %v510 = vcvt.s32.f32 %v506
        %s511 = scalar_lea.vmem %s298, 8 [#allocation7]
        %v512 = vld [vmem:[%s511] sm:$0xff]
        %v514 = vsel %vm451, %v512, 0
        %516 = vmatpush.msra.mxu0 0.0
        %517 = vmatpush.msra.mxu0 0.0
        %518 = vmatpush.msra.mxu0 0.0
        %519 = vmatpush.msra.mxu0 0.0
        %520 = vmatpush.msra.mxu0 0.0
        %521 = vmatpush.msra.mxu0 0.0
        %522 = vmatpush.msra.mxu0 0.0
        %523 = vmatpush.msra.mxu0 0.0
        %524 = vmatpush.msra.mxu0 0.0
        %525 = vmatpush.msra.mxu0 0.0
        %526 = vmatpush.msra.mxu0 0.0
        %527 = vmatpush.msra.mxu0 0.0
        %528 = vmatpush.msra.mxu0 %v510
        %529 = vmatpush.msra.mxu0 %v509
        %530 = vmatpush.msra.mxu0 %v508
        %531 = vmatpush.msra.mxu0 %v507
        %532 = vmatmul.f32.gmra.mxu0 %v514
        %v533 = vpop.f32.mrf.mxu0
        %v534 = vadd.f32 0.0, %v533
        %535 = vdwg.mxu0
        %v537 = vrot.slane %v534, 1
        %v538 = vrot.slane %v534, 2
        %v539 = vrot.slane %v534, 3
        %v540 = vrot.slane %v534, 4
        %v541 = vrot.slane %v534, 5
        %v542 = vrot.slane %v534, 6
        %v543 = vrot.slane %v534, 7
        %551 = vst [vmem:[#allocation2 + $0x1] sm:$0x1] %v534
        %552 = vst [vmem:[#allocation2 + $0x9] sm:$0x1] %v537
        %553 = vst [vmem:[#allocation2 + $0x11] sm:$0x1] %v538
        %554 = vst [vmem:[#allocation2 + $0x19] sm:$0x1] %v539
        %555 = vst [vmem:[#allocation2 + $0x21] sm:$0x1] %v540
        %556 = vst [vmem:[#allocation2 + $0x29] sm:$0x1] %v541
        %557 = vst [vmem:[#allocation2 + $0x31] sm:$0x1] %v542
        %558 = vst [vmem:[#allocation2 + $0x39] sm:$0x1] %v543
        %v559 = vperm.slane %v414, 2
        %vm560 = vcmp.eq.s32.totalorder %v433, %v559
        %vm561 = vcmp.eq.s32.totalorder %v434, %v559
        %vm562 = vcmp.eq.s32.totalorder %v435, %v559
        %vm563 = vcmp.eq.s32.totalorder %v436, %v559
        %v564 = vsel %vm560, 1, 0
        %v565 = vsel %vm561, 1, 0
        %v566 = vsel %vm562, 1, 0
        %v567 = vsel %vm563, 1, 0
        %v568 = vcvt.s32.f32 %v564
        %v569 = vcvt.s32.f32 %v565
        %v570 = vcvt.s32.f32 %v566
        %v571 = vcvt.s32.f32 %v567
        %s572 = scalar_lea.vmem %s298, 16 [#allocation7]
        %v573 = vld [vmem:[%s572] sm:$0xff]
        %v575 = vsel %vm451, %v573, 0
        %577 = vmatpush.msra.mxu0 0.0
        %578 = vmatpush.msra.mxu0 0.0
        %579 = vmatpush.msra.mxu0 0.0
        %580 = vmatpush.msra.mxu0 0.0
        %581 = vmatpush.msra.mxu0 0.0
        %582 = vmatpush.msra.mxu0 0.0
        %583 = vmatpush.msra.mxu0 0.0
        %584 = vmatpush.msra.mxu0 0.0
        %585 = vmatpush.msra.mxu0 0.0
        %586 = vmatpush.msra.mxu0 0.0
        %587 = vmatpush.msra.mxu0 0.0
        %588 = vmatpush.msra.mxu0 0.0
        %589 = vmatpush.msra.mxu0 %v571
        %590 = vmatpush.msra.mxu0 %v570
        %591 = vmatpush.msra.mxu0 %v569
        %592 = vmatpush.msra.mxu0 %v568
        %593 = vmatmul.f32.gmra.mxu0 %v575
        %v594 = vpop.f32.mrf.mxu0
        %v595 = vadd.f32 0.0, %v594
        %596 = vdwg.mxu0
        %v598 = vrot.slane %v595, 1
        %v599 = vrot.slane %v595, 2
        %v600 = vrot.slane %v595, 3
        %v601 = vrot.slane %v595, 4
        %v602 = vrot.slane %v595, 5
        %v603 = vrot.slane %v595, 6
        %v604 = vrot.slane %v595, 7
        %612 = vst [vmem:[#allocation2 + $0x2] sm:$0x1] %v595
        %613 = vst [vmem:[#allocation2 + $0xa] sm:$0x1] %v598
        %614 = vst [vmem:[#allocation2 + $0x12] sm:$0x1] %v599
        %615 = vst [vmem:[#allocation2 + $0x1a] sm:$0x1] %v600
        %616 = vst [vmem:[#allocation2 + $0x22] sm:$0x1] %v601
        %617 = vst [vmem:[#allocation2 + $0x2a] sm:$0x1] %v602
        %618 = vst [vmem:[#allocation2 + $0x32] sm:$0x1] %v603
        %619 = vst [vmem:[#allocation2 + $0x3a] sm:$0x1] %v604
        %v620 = vperm.slane %v414, 3
        %vm621 = vcmp.eq.s32.totalorder %v433, %v620
        %vm622 = vcmp.eq.s32.totalorder %v434, %v620
        %vm623 = vcmp.eq.s32.totalorder %v435, %v620
        %vm624 = vcmp.eq.s32.totalorder %v436, %v620
        %v625 = vsel %vm621, 1, 0
        %v626 = vsel %vm622, 1, 0
        %v627 = vsel %vm623, 1, 0
        %v628 = vsel %vm624, 1, 0
        %v629 = vcvt.s32.f32 %v625
        %v630 = vcvt.s32.f32 %v626
        %v631 = vcvt.s32.f32 %v627
        %v632 = vcvt.s32.f32 %v628
        %s633 = scalar_lea.vmem %s298, 24 [#allocation7]
        %v634 = vld [vmem:[%s633] sm:$0xff]
        %v636 = vsel %vm451, %v634, 0
        %638 = vmatpush.msra.mxu0 0.0
        %639 = vmatpush.msra.mxu0 0.0
        %640 = vmatpush.msra.mxu0 0.0
        %641 = vmatpush.msra.mxu0 0.0
        %642 = vmatpush.msra.mxu0 0.0
        %643 = vmatpush.msra.mxu0 0.0
        %644 = vmatpush.msra.mxu0 0.0
        %645 = vmatpush.msra.mxu0 0.0
        %646 = vmatpush.msra.mxu0 0.0
        %647 = vmatpush.msra.mxu0 0.0
        %648 = vmatpush.msra.mxu0 0.0
        %649 = vmatpush.msra.mxu0 0.0
        %650 = vmatpush.msra.mxu0 %v632
        %651 = vmatpush.msra.mxu0 %v631
        %652 = vmatpush.msra.mxu0 %v630
        %653 = vmatpush.msra.mxu0 %v629
        %654 = vmatmul.f32.gmra.mxu0 %v636
        %v655 = vpop.f32.mrf.mxu0
        %v656 = vadd.f32 0.0, %v655
        %657 = vdwg.mxu0
        %v659 = vrot.slane %v656, 1
        %v660 = vrot.slane %v656, 2
        %v661 = vrot.slane %v656, 3
        %v662 = vrot.slane %v656, 4
        %v663 = vrot.slane %v656, 5
        %v664 = vrot.slane %v656, 6
        %v665 = vrot.slane %v656, 7
        %673 = vst [vmem:[#allocation2 + $0x3] sm:$0x1] %v656
        %674 = vst [vmem:[#allocation2 + $0xb] sm:$0x1] %v659
        %675 = vst [vmem:[#allocation2 + $0x13] sm:$0x1] %v660
        %676 = vst [vmem:[#allocation2 + $0x1b] sm:$0x1] %v661
        %677 = vst [vmem:[#allocation2 + $0x23] sm:$0x1] %v662
        %678 = vst [vmem:[#allocation2 + $0x2b] sm:$0x1] %v663
        %679 = vst [vmem:[#allocation2 + $0x33] sm:$0x1] %v664
        %680 = vst [vmem:[#allocation2 + $0x3b] sm:$0x1] %v665
        %v681 = vperm.slane %v414, 4
        %vm682 = vcmp.eq.s32.totalorder %v433, %v681
        %vm683 = vcmp.eq.s32.totalorder %v434, %v681
        %vm684 = vcmp.eq.s32.totalorder %v435, %v681
        %vm685 = vcmp.eq.s32.totalorder %v436, %v681
        %v686 = vsel %vm682, 1, 0
        %v687 = vsel %vm683, 1, 0
        %v688 = vsel %vm684, 1, 0
        %v689 = vsel %vm685, 1, 0
        %v690 = vcvt.s32.f32 %v686
        %v691 = vcvt.s32.f32 %v687
        %v692 = vcvt.s32.f32 %v688
        %v693 = vcvt.s32.f32 %v689
        %s694 = scalar_lea.vmem %s298, 32 [#allocation7]
        %v695 = vld [vmem:[%s694] sm:$0xff]
        %v697 = vsel %vm451, %v695, 0
        %699 = vmatpush.msra.mxu0 0.0
        %700 = vmatpush.msra.mxu0 0.0
        %701 = vmatpush.msra.mxu0 0.0
        %702 = vmatpush.msra.mxu0 0.0
        %703 = vmatpush.msra.mxu0 0.0
        %704 = vmatpush.msra.mxu0 0.0
        %705 = vmatpush.msra.mxu0 0.0
        %706 = vmatpush.msra.mxu0 0.0
        %707 = vmatpush.msra.mxu0 0.0
        %708 = vmatpush.msra.mxu0 0.0
        %709 = vmatpush.msra.mxu0 0.0
        %710 = vmatpush.msra.mxu0 0.0
        %711 = vmatpush.msra.mxu0 %v693
        %712 = vmatpush.msra.mxu0 %v692
        %713 = vmatpush.msra.mxu0 %v691
        %714 = vmatpush.msra.mxu0 %v690
        %715 = vmatmul.f32.gmra.mxu0 %v697
        %v716 = vpop.f32.mrf.mxu0
        %v717 = vadd.f32 0.0, %v716
        %718 = vdwg.mxu0
        %v720 = vrot.slane %v717, 1
        %v721 = vrot.slane %v717, 2
        %v722 = vrot.slane %v717, 3
        %v723 = vrot.slane %v717, 4
        %v724 = vrot.slane %v717, 5
        %v725 = vrot.slane %v717, 6
        %v726 = vrot.slane %v717, 7
        %734 = vst [vmem:[#allocation2 + $0x4] sm:$0x1] %v717
        %735 = vst [vmem:[#allocation2 + $0xc] sm:$0x1] %v720
        %736 = vst [vmem:[#allocation2 + $0x14] sm:$0x1] %v721
        %737 = vst [vmem:[#allocation2 + $0x1c] sm:$0x1] %v722
        %738 = vst [vmem:[#allocation2 + $0x24] sm:$0x1] %v723
        %739 = vst [vmem:[#allocation2 + $0x2c] sm:$0x1] %v724
        %740 = vst [vmem:[#allocation2 + $0x34] sm:$0x1] %v725
        %741 = vst [vmem:[#allocation2 + $0x3c] sm:$0x1] %v726
        %v742 = vperm.slane %v414, 5
        %vm743 = vcmp.eq.s32.totalorder %v433, %v742
        %vm744 = vcmp.eq.s32.totalorder %v434, %v742
        %vm745 = vcmp.eq.s32.totalorder %v435, %v742
        %vm746 = vcmp.eq.s32.totalorder %v436, %v742
        %v747 = vsel %vm743, 1, 0
        %v748 = vsel %vm744, 1, 0
        %v749 = vsel %vm745, 1, 0
        %v750 = vsel %vm746, 1, 0
        %v751 = vcvt.s32.f32 %v747
        %v752 = vcvt.s32.f32 %v748
        %v753 = vcvt.s32.f32 %v749
        %v754 = vcvt.s32.f32 %v750
        %s755 = scalar_lea.vmem %s298, 40 [#allocation7]
        %v756 = vld [vmem:[%s755] sm:$0xff]
        %v758 = vsel %vm451, %v756, 0
        %760 = vmatpush.msra.mxu0 0.0
        %761 = vmatpush.msra.mxu0 0.0
        %762 = vmatpush.msra.mxu0 0.0
        %763 = vmatpush.msra.mxu0 0.0
        %764 = vmatpush.msra.mxu0 0.0
        %765 = vmatpush.msra.mxu0 0.0
        %766 = vmatpush.msra.mxu0 0.0
        %767 = vmatpush.msra.mxu0 0.0
        %768 = vmatpush.msra.mxu0 0.0
        %769 = vmatpush.msra.mxu0 0.0
        %770 = vmatpush.msra.mxu0 0.0
        %771 = vmatpush.msra.mxu0 0.0
        %772 = vmatpush.msra.mxu0 %v754
        %773 = vmatpush.msra.mxu0 %v753
        %774 = vmatpush.msra.mxu0 %v752
        %775 = vmatpush.msra.mxu0 %v751
        %776 = vmatmul.f32.gmra.mxu0 %v758
        %v777 = vpop.f32.mrf.mxu0
        %v778 = vadd.f32 0.0, %v777
        %779 = vdwg.mxu0
        %v781 = vrot.slane %v778, 1
        %v782 = vrot.slane %v778, 2
        %v783 = vrot.slane %v778, 3
        %v784 = vrot.slane %v778, 4
        %v785 = vrot.slane %v778, 5
        %v786 = vrot.slane %v778, 6
        %v787 = vrot.slane %v778, 7
        %795 = vst [vmem:[#allocation2 + $0x5] sm:$0x1] %v778
        %796 = vst [vmem:[#allocation2 + $0xd] sm:$0x1] %v781
        %797 = vst [vmem:[#allocation2 + $0x15] sm:$0x1] %v782
        %798 = vst [vmem:[#allocation2 + $0x1d] sm:$0x1] %v783
        %799 = vst [vmem:[#allocation2 + $0x25] sm:$0x1] %v784
        %800 = vst [vmem:[#allocation2 + $0x2d] sm:$0x1] %v785
        %801 = vst [vmem:[#allocation2 + $0x35] sm:$0x1] %v786
        %802 = vst [vmem:[#allocation2 + $0x3d] sm:$0x1] %v787
        %v803 = vperm.slane %v414, 6
        %vm804 = vcmp.eq.s32.totalorder %v433, %v803
        %vm805 = vcmp.eq.s32.totalorder %v434, %v803
        %vm806 = vcmp.eq.s32.totalorder %v435, %v803
        %vm807 = vcmp.eq.s32.totalorder %v436, %v803
        %v808 = vsel %vm804, 1, 0
        %v809 = vsel %vm805, 1, 0
        %v810 = vsel %vm806, 1, 0
        %v811 = vsel %vm807, 1, 0
        %v812 = vcvt.s32.f32 %v808
        %v813 = vcvt.s32.f32 %v809
        %v814 = vcvt.s32.f32 %v810
        %v815 = vcvt.s32.f32 %v811
        %s816 = scalar_lea.vmem %s298, 48 [#allocation7]
        %v817 = vld [vmem:[%s816] sm:$0xff]
        %v819 = vsel %vm451, %v817, 0
        %821 = vmatpush.msra.mxu0 0.0
        %822 = vmatpush.msra.mxu0 0.0
        %823 = vmatpush.msra.mxu0 0.0
        %824 = vmatpush.msra.mxu0 0.0
        %825 = vmatpush.msra.mxu0 0.0
        %826 = vmatpush.msra.mxu0 0.0
        %827 = vmatpush.msra.mxu0 0.0
        %828 = vmatpush.msra.mxu0 0.0
        %829 = vmatpush.msra.mxu0 0.0
        %830 = vmatpush.msra.mxu0 0.0
        %831 = vmatpush.msra.mxu0 0.0
        %832 = vmatpush.msra.mxu0 0.0
        %833 = vmatpush.msra.mxu0 %v815
        %834 = vmatpush.msra.mxu0 %v814
        %835 = vmatpush.msra.mxu0 %v813
        %836 = vmatpush.msra.mxu0 %v812
        %837 = vmatmul.f32.gmra.mxu0 %v819
        %v838 = vpop.f32.mrf.mxu0
        %v839 = vadd.f32 0.0, %v838
        %840 = vdwg.mxu0
        %v842 = vrot.slane %v839, 1
        %v843 = vrot.slane %v839, 2
        %v844 = vrot.slane %v839, 3
        %v845 = vrot.slane %v839, 4
        %v846 = vrot.slane %v839, 5
        %v847 = vrot.slane %v839, 6
        %v848 = vrot.slane %v839, 7
        %856 = vst [vmem:[#allocation2 + $0x6] sm:$0x1] %v839
        %857 = vst [vmem:[#allocation2 + $0xe] sm:$0x1] %v842
        %858 = vst [vmem:[#allocation2 + $0x16] sm:$0x1] %v843
        %859 = vst [vmem:[#allocation2 + $0x1e] sm:$0x1] %v844
        %860 = vst [vmem:[#allocation2 + $0x26] sm:$0x1] %v845
        %861 = vst [vmem:[#allocation2 + $0x2e] sm:$0x1] %v846
        %862 = vst [vmem:[#allocation2 + $0x36] sm:$0x1] %v847
        %863 = vst [vmem:[#allocation2 + $0x3e] sm:$0x1] %v848
        %v864 = vperm.slane %v414, 7
        %vm865 = vcmp.eq.s32.totalorder %v433, %v864
        %vm866 = vcmp.eq.s32.totalorder %v434, %v864
        %vm867 = vcmp.eq.s32.totalorder %v435, %v864
        %vm868 = vcmp.eq.s32.totalorder %v436, %v864
        %v869 = vsel %vm865, 1, 0
        %v870 = vsel %vm866, 1, 0
        %v871 = vsel %vm867, 1, 0
        %v872 = vsel %vm868, 1, 0
        %v873 = vcvt.s32.f32 %v869
        %v874 = vcvt.s32.f32 %v870
        %v875 = vcvt.s32.f32 %v871
        %v876 = vcvt.s32.f32 %v872
        %s877 = scalar_lea.vmem %s298, 56 [#allocation7]
        %v878 = vld [vmem:[%s877] sm:$0xff]
        %v880 = vsel %vm451, %v878, 0
        %882 = vmatpush.msra.mxu0 0.0
        %883 = vmatpush.msra.mxu0 0.0
        %884 = vmatpush.msra.mxu0 0.0
        %885 = vmatpush.msra.mxu0 0.0
        %886 = vmatpush.msra.mxu0 0.0
        %887 = vmatpush.msra.mxu0 0.0
        %888 = vmatpush.msra.mxu0 0.0
        %889 = vmatpush.msra.mxu0 0.0
        %890 = vmatpush.msra.mxu0 0.0
        %891 = vmatpush.msra.mxu0 0.0
        %892 = vmatpush.msra.mxu0 0.0
        %893 = vmatpush.msra.mxu0 0.0
        %894 = vmatpush.msra.mxu0 %v876
        %895 = vmatpush.msra.mxu0 %v875
        %896 = vmatpush.msra.mxu0 %v874
        %897 = vmatpush.msra.mxu0 %v873
        %898 = vmatmul.f32.gmra.mxu0 %v880
        %v899 = vpop.f32.mrf.mxu0
        %v900 = vadd.f32 0.0, %v899
        %901 = vdwg.mxu0
        %v903 = vrot.slane %v900, 1
        %v904 = vrot.slane %v900, 2
        %v905 = vrot.slane %v900, 3
        %v906 = vrot.slane %v900, 4
        %v907 = vrot.slane %v900, 5
        %v908 = vrot.slane %v900, 6
        %v909 = vrot.slane %v900, 7
        %917 = vst [vmem:[#allocation2 + $0x7] sm:$0x1] %v900
        %918 = vst [vmem:[#allocation2 + $0xf] sm:$0x1] %v903
        %919 = vst [vmem:[#allocation2 + $0x17] sm:$0x1] %v904
        %920 = vst [vmem:[#allocation2 + $0x1f] sm:$0x1] %v905
        %921 = vst [vmem:[#allocation2 + $0x27] sm:$0x1] %v906
        %922 = vst [vmem:[#allocation2 + $0x2f] sm:$0x1] %v907
        %923 = vst [vmem:[#allocation2 + $0x37] sm:$0x1] %v908
        %924 = vst [vmem:[#allocation2 + $0x3f] sm:$0x1] %v909
        %p925 = scmp.eq.s32.totalorder %s27, 0
        // Predicated region
        $region53: #{tpu_custom_call.1} parent=43 // pred_check
          %p926 = pneg %p925
        $region54: #{tpu_custom_call.1} parent=43 // pred_check_branch
          %928 = sbr.rel (%p926) target = $region56
        $region55: #{tpu_custom_call.1} parent=43 // pred_region
          %929 = vst [vmem:[#allocation3] sm:$0xff] -1e+30
        $region56: #{tpu_custom_call.1} parent=43 // pred_fallthru
          _
        %s930 = smul.u32 %s27, 8
        %v931 = vld [vmem:[#allocation3] sm:$0xff]
        %v932 = vld [vmem:[#allocation2] sm:$0xff]
        %933 = vrot.lane.b32.xlu0 %v931, 1
        %v934 = vpop.permute.xlu0 %933
        %v935 = vsel %vm421, %v934, -1e+30
        %936 = vrot.lane.b32.xlu0 %v931, 2
        %v937 = vpop.permute.xlu0 %936
        %v938 = vsel %vm420, %v937, -1e+30
        %v939 = vmax.f32 %v931, %v935
        %v940 = vmax.f32 %v939, %v938
        %v941 = vsub.f32 %v931, %v940
        %v942 = vmul.f32 %v941, 1.442695
        %v943 = vpow.pop %v942
        %v944 = vsub.f32 %v935, %v940
        %v945 = vmul.f32 %v944, 1.442695
        %v946 = vpow.pop %v945
        %v947 = vadd.f32 %v943, %v946
        %v948 = vsub.f32 %v938, %v940
        %v949 = vmul.f32 %v948, 1.442695
        %v950 = vpow.pop %v949
        %v951 = vadd.f32 %v947, %v950
        %v952 = vlog2.pop %v951
        %v953 = vmul.f32 %v952, 0.6931472
        %v954 = vadd.f32 %v940, %v953
        %v955 = vadd.f32 %v954, %v932
        %p956 = scmp.eq.s32.totalorder %s930, 0
        %v957 = vsel %vm431, %v932, -1e+30
        %s958 = scalar_select %p956, 1, 0
        %v959 = vstv %s958
        %vm960 = vcmp.eq.s32.totalorder %v959, 1
        %v961 = vsel %vm960, %v957, %v955
        %v962 = vstv %s930
        %vm963 = vcmp.lt.s32.totalorder %v962, %v348
        %v964 = vsel %vm963, 1, 0
        %965 = vset.pattern.permute.xlu0 0
        %966 = vperm.xlu0 %965, %v964
        %v967 = vpop.permute.xlu0 %966
        %vm968 = vcmp.eq.s32.totalorder %v967, 1
        %v969 = vsel %vm968, %v961, %v931
        %s970 = scalar_lea.vmem [#allocation2], 8
        %v971 = vld [vmem:[%s970] sm:$0xff]
        %972 = vrot.lane.b32.xlu0 %v969, 1
        %v973 = vpop.permute.xlu0 %972
        %v974 = vsel %vm421, %v973, -1e+30
        %975 = vrot.lane.b32.xlu0 %v969, 2
        %v976 = vpop.permute.xlu0 %975
        %v977 = vsel %vm420, %v976, -1e+30
        %v978 = vmax.f32 %v969, %v974
        %v979 = vmax.f32 %v978, %v977
        %v980 = vsub.f32 %v969, %v979
        %v981 = vmul.f32 %v980, 1.442695
        %v982 = vpow.pop %v981
        %v983 = vsub.f32 %v974, %v979
        %v984 = vmul.f32 %v983, 1.442695
        %v985 = vpow.pop %v984
        %v986 = vadd.f32 %v982, %v985
        %v987 = vsub.f32 %v977, %v979
        %v988 = vmul.f32 %v987, 1.442695
        %v989 = vpow.pop %v988
        %v990 = vadd.f32 %v986, %v989
        %v991 = vlog2.pop %v990
        %v992 = vmul.f32 %v991, 0.6931472
        %v993 = vadd.f32 %v979, %v992
        %v994 = vadd.f32 %v993, %v971
        %s995 = sadd.s32 %s930, 1
        %p996 = scmp.eq.s32.totalorder %s995, 0
        %v997 = vsel %vm431, %v971, -1e+30
        %s998 = scalar_select %p996, 1, 0
        %v999 = vstv %s998
        %vm1000 = vcmp.eq.s32.totalorder %v999, 1
        %v1001 = vsel %vm1000, %v997, %v994
        %v1002 = vstv %s995
        %vm1003 = vcmp.lt.s32.totalorder %v1002, %v348
        %v1004 = vsel %vm1003, 1, 0
        %1005 = vset.pattern.permute.xlu0 0
        %1006 = vperm.xlu0 %1005, %v1004
        %v1007 = vpop.permute.xlu0 %1006
        %vm1008 = vcmp.eq.s32.totalorder %v1007, 1
        %v1009 = vsel %vm1008, %v1001, %v969
        %s1010 = scalar_lea.vmem [#allocation2], 16
        %v1011 = vld [vmem:[%s1010] sm:$0xff]
        %1012 = vrot.lane.b32.xlu0 %v1009, 1
        %v1013 = vpop.permute.xlu0 %1012
        %v1014 = vsel %vm421, %v1013, -1e+30
        %1015 = vrot.lane.b32.xlu0 %v1009, 2
        %v1016 = vpop.permute.xlu0 %1015
        %v1017 = vsel %vm420, %v1016, -1e+30
        %v1018 = vmax.f32 %v1009, %v1014
        %v1019 = vmax.f32 %v1018, %v1017
        %v1020 = vsub.f32 %v1009, %v1019
        %v1021 = vmul.f32 %v1020, 1.442695
        %v1022 = vpow.pop %v1021
        %v1023 = vsub.f32 %v1014, %v1019
        %v1024 = vmul.f32 %v1023, 1.442695
        %v1025 = vpow.pop %v1024
        %v1026 = vadd.f32 %v1022, %v1025
        %v1027 = vsub.f32 %v1017, %v1019
        %v1028 = vmul.f32 %v1027, 1.442695
        %v1029 = vpow.pop %v1028
        %v1030 = vadd.f32 %v1026, %v1029
        %v1031 = vlog2.pop %v1030
        %v1032 = vmul.f32 %v1031, 0.6931472
        %v1033 = vadd.f32 %v1019, %v1032
        %v1034 = vadd.f32 %v1033, %v1011
        %s1035 = sadd.s32 %s930, 2
        %p1036 = scmp.eq.s32.totalorder %s1035, 0
        %v1037 = vsel %vm431, %v1011, -1e+30
        %s1038 = scalar_select %p1036, 1, 0
        %v1039 = vstv %s1038
        %vm1040 = vcmp.eq.s32.totalorder %v1039, 1
        %v1041 = vsel %vm1040, %v1037, %v1034
        %v1042 = vstv %s1035
        %vm1043 = vcmp.lt.s32.totalorder %v1042, %v348
        %v1044 = vsel %vm1043, 1, 0
        %1045 = vset.pattern.permute.xlu0 0
        %1046 = vperm.xlu0 %1045, %v1044
        %v1047 = vpop.permute.xlu0 %1046
        %vm1048 = vcmp.eq.s32.totalorder %v1047, 1
        %v1049 = vsel %vm1048, %v1041, %v1009
        %s1050 = scalar_lea.vmem [#allocation2], 24
        %v1051 = vld [vmem:[%s1050] sm:$0xff]
        %1052 = vrot.lane.b32.xlu0 %v1049, 1
        %v1053 = vpop.permute.xlu0 %1052
        %v1054 = vsel %vm421, %v1053, -1e+30
        %1055 = vrot.lane.b32.xlu0 %v1049, 2
        %v1056 = vpop.permute.xlu0 %1055
        %v1057 = vsel %vm420, %v1056, -1e+30
        %v1058 = vmax.f32 %v1049, %v1054
        %v1059 = vmax.f32 %v1058, %v1057
        %v1060 = vsub.f32 %v1049, %v1059
        %v1061 = vmul.f32 %v1060, 1.442695
        %v1062 = vpow.pop %v1061
        %v1063 = vsub.f32 %v1054, %v1059
        %v1064 = vmul.f32 %v1063, 1.442695
        %v1065 = vpow.pop %v1064
        %v1066 = vadd.f32 %v1062, %v1065
        %v1067 = vsub.f32 %v1057, %v1059
        %v1068 = vmul.f32 %v1067, 1.442695
        %v1069 = vpow.pop %v1068
        %v1070 = vadd.f32 %v1066, %v1069
        %v1071 = vlog2.pop %v1070
        %v1072 = vmul.f32 %v1071, 0.6931472
        %v1073 = vadd.f32 %v1059, %v1072
        %v1074 = vadd.f32 %v1073, %v1051
        %s1075 = sadd.s32 %s930, 3
        %p1076 = scmp.eq.s32.totalorder %s1075, 0
        %v1077 = vsel %vm431, %v1051, -1e+30
        %s1078 = scalar_select %p1076, 1, 0
        %v1079 = vstv %s1078
        %vm1080 = vcmp.eq.s32.totalorder %v1079, 1
        %v1081 = vsel %vm1080, %v1077, %v1074
        %v1082 = vstv %s1075
        %vm1083 = vcmp.lt.s32.totalorder %v1082, %v348
        %v1084 = vsel %vm1083, 1, 0
        %1085 = vset.pattern.permute.xlu0 0
        %1086 = vperm.xlu0 %1085, %v1084
        %v1087 = vpop.permute.xlu0 %1086
        %vm1088 = vcmp.eq.s32.totalorder %v1087, 1
        %v1089 = vsel %vm1088, %v1081, %v1049
        %s1090 = scalar_lea.vmem [#allocation2], 32
        %v1091 = vld [vmem:[%s1090] sm:$0xff]
        %1092 = vrot.lane.b32.xlu0 %v1089, 1
        %v1093 = vpop.permute.xlu0 %1092
        %v1094 = vsel %vm421, %v1093, -1e+30
        %1095 = vrot.lane.b32.xlu0 %v1089, 2
        %v1096 = vpop.permute.xlu0 %1095
        %v1097 = vsel %vm420, %v1096, -1e+30
        %v1098 = vmax.f32 %v1089, %v1094
        %v1099 = vmax.f32 %v1098, %v1097
        %v1100 = vsub.f32 %v1089, %v1099
        %v1101 = vmul.f32 %v1100, 1.442695
        %v1102 = vpow.pop %v1101
        %v1103 = vsub.f32 %v1094, %v1099
        %v1104 = vmul.f32 %v1103, 1.442695
        %v1105 = vpow.pop %v1104
        %v1106 = vadd.f32 %v1102, %v1105
        %v1107 = vsub.f32 %v1097, %v1099
        %v1108 = vmul.f32 %v1107, 1.442695
        %v1109 = vpow.pop %v1108
        %v1110 = vadd.f32 %v1106, %v1109
        %v1111 = vlog2.pop %v1110
        %v1112 = vmul.f32 %v1111, 0.6931472
        %v1113 = vadd.f32 %v1099, %v1112
        %v1114 = vadd.f32 %v1113, %v1091
        %s1115 = sadd.s32 %s930, 4
        %p1116 = scmp.eq.s32.totalorder %s1115, 0
        %v1117 = vsel %vm431, %v1091, -1e+30
        %s1118 = scalar_select %p1116, 1, 0
        %v1119 = vstv %s1118
        %vm1120 = vcmp.eq.s32.totalorder %v1119, 1
        %v1121 = vsel %vm1120, %v1117, %v1114
        %v1122 = vstv %s1115
        %vm1123 = vcmp.lt.s32.totalorder %v1122, %v348
        %v1124 = vsel %vm1123, 1, 0
        %1125 = vset.pattern.permute.xlu0 0
        %1126 = vperm.xlu0 %1125, %v1124
        %v1127 = vpop.permute.xlu0 %1126
        %vm1128 = vcmp.eq.s32.totalorder %v1127, 1
        %v1129 = vsel %vm1128, %v1121, %v1089
        %s1130 = scalar_lea.vmem [#allocation2], 40
        %v1131 = vld [vmem:[%s1130] sm:$0xff]
        %1132 = vrot.lane.b32.xlu0 %v1129, 1
        %v1133 = vpop.permute.xlu0 %1132
        %v1134 = vsel %vm421, %v1133, -1e+30
        %1135 = vrot.lane.b32.xlu0 %v1129, 2
        %v1136 = vpop.permute.xlu0 %1135
        %v1137 = vsel %vm420, %v1136, -1e+30
        %v1138 = vmax.f32 %v1129, %v1134
        %v1139 = vmax.f32 %v1138, %v1137
        %v1140 = vsub.f32 %v1129, %v1139
        %v1141 = vmul.f32 %v1140, 1.442695
        %v1142 = vpow.pop %v1141
        %v1143 = vsub.f32 %v1134, %v1139
        %v1144 = vmul.f32 %v1143, 1.442695
        %v1145 = vpow.pop %v1144
        %v1146 = vadd.f32 %v1142, %v1145
        %v1147 = vsub.f32 %v1137, %v1139
        %v1148 = vmul.f32 %v1147, 1.442695
        %v1149 = vpow.pop %v1148
        %v1150 = vadd.f32 %v1146, %v1149
        %v1151 = vlog2.pop %v1150
        %v1152 = vmul.f32 %v1151, 0.6931472
        %v1153 = vadd.f32 %v1139, %v1152
        %v1154 = vadd.f32 %v1153, %v1131
        %s1155 = sadd.s32 %s930, 5
        %p1156 = scmp.eq.s32.totalorder %s1155, 0
        %v1157 = vsel %vm431, %v1131, -1e+30
        %s1158 = scalar_select %p1156, 1, 0
        %v1159 = vstv %s1158
        %vm1160 = vcmp.eq.s32.totalorder %v1159, 1
        %v1161 = vsel %vm1160, %v1157, %v1154
        %v1162 = vstv %s1155
        %vm1163 = vcmp.lt.s32.totalorder %v1162, %v348
        %v1164 = vsel %vm1163, 1, 0
        %1165 = vset.pattern.permute.xlu0 0
        %1166 = vperm.xlu0 %1165, %v1164
        %v1167 = vpop.permute.xlu0 %1166
        %vm1168 = vcmp.eq.s32.totalorder %v1167, 1
        %v1169 = vsel %vm1168, %v1161, %v1129
        %s1170 = scalar_lea.vmem [#allocation2], 48
        %v1171 = vld [vmem:[%s1170] sm:$0xff]
        %1172 = vrot.lane.b32.xlu0 %v1169, 1
        %v1173 = vpop.permute.xlu0 %1172
        %v1174 = vsel %vm421, %v1173, -1e+30
        %1175 = vrot.lane.b32.xlu0 %v1169, 2
        %v1176 = vpop.permute.xlu0 %1175
        %v1177 = vsel %vm420, %v1176, -1e+30
        %v1178 = vmax.f32 %v1169, %v1174
        %v1179 = vmax.f32 %v1178, %v1177
        %v1180 = vsub.f32 %v1169, %v1179
        %v1181 = vmul.f32 %v1180, 1.442695
        %v1182 = vpow.pop %v1181
        %v1183 = vsub.f32 %v1174, %v1179
        %v1184 = vmul.f32 %v1183, 1.442695
        %v1185 = vpow.pop %v1184
        %v1186 = vadd.f32 %v1182, %v1185
        %v1187 = vsub.f32 %v1177, %v1179
        %v1188 = vmul.f32 %v1187, 1.442695
        %v1189 = vpow.pop %v1188
        %v1190 = vadd.f32 %v1186, %v1189
        %v1191 = vlog2.pop %v1190
        %v1192 = vmul.f32 %v1191, 0.6931472
        %v1193 = vadd.f32 %v1179, %v1192
        %v1194 = vadd.f32 %v1193, %v1171
        %s1195 = sadd.s32 %s930, 6
        %p1196 = scmp.eq.s32.totalorder %s1195, 0
        %v1197 = vsel %vm431, %v1171, -1e+30
        %s1198 = scalar_select %p1196, 1, 0
        %v1199 = vstv %s1198
        %vm1200 = vcmp.eq.s32.totalorder %v1199, 1
        %v1201 = vsel %vm1200, %v1197, %v1194
        %v1202 = vstv %s1195
        %vm1203 = vcmp.lt.s32.totalorder %v1202, %v348
        %v1204 = vsel %vm1203, 1, 0
        %1205 = vset.pattern.permute.xlu0 0
        %1206 = vperm.xlu0 %1205, %v1204
        %v1207 = vpop.permute.xlu0 %1206
        %vm1208 = vcmp.eq.s32.totalorder %v1207, 1
        %v1209 = vsel %vm1208, %v1201, %v1169
        %s1210 = scalar_lea.vmem [#allocation2], 56
        %v1211 = vld [vmem:[%s1210] sm:$0xff]
        %1212 = vrot.lane.b32.xlu0 %v1209, 1
        %v1213 = vpop.permute.xlu0 %1212
        %v1214 = vsel %vm421, %v1213, -1e+30
        %1215 = vrot.lane.b32.xlu0 %v1209, 2
        %v1216 = vpop.permute.xlu0 %1215
        %v1217 = vsel %vm420, %v1216, -1e+30
        %v1218 = vmax.f32 %v1209, %v1214
        %v1219 = vmax.f32 %v1218, %v1217
        %v1220 = vsub.f32 %v1209, %v1219
        %v1221 = vmul.f32 %v1220, 1.442695
        %v1222 = vpow.pop %v1221
        %v1223 = vsub.f32 %v1214, %v1219
        %v1224 = vmul.f32 %v1223, 1.442695
        %v1225 = vpow.pop %v1224
        %v1226 = vadd.f32 %v1222, %v1225
        %v1227 = vsub.f32 %v1217, %v1219
        %v1228 = vmul.f32 %v1227, 1.442695
        %v1229 = vpow.pop %v1228
        %v1230 = vadd.f32 %v1226, %v1229
        %v1231 = vlog2.pop %v1230
        %v1232 = vmul.f32 %v1231, 0.6931472
        %v1233 = vadd.f32 %v1219, %v1232
        %v1234 = vadd.f32 %v1233, %v1211
        %s1235 = sadd.s32 %s930, 7
        %p1236 = scmp.eq.s32.totalorder %s1235, 0
        %v1237 = vsel %vm431, %v1211, -1e+30
        %s1238 = scalar_select %p1236, 1, 0
        %v1239 = vstv %s1238
        %vm1240 = vcmp.eq.s32.totalorder %v1239, 1
        %v1241 = vsel %vm1240, %v1237, %v1234
        %v1242 = vstv %s1235
        %vm1243 = vcmp.lt.s32.totalorder %v1242, %v348
        %v1244 = vsel %vm1243, 1, 0
        %1245 = vset.pattern.permute.xlu0 0
        %1246 = vperm.xlu0 %1245, %v1244
        %v1247 = vpop.permute.xlu0 %1246
        %vm1248 = vcmp.eq.s32.totalorder %v1247, 1
        %v1249 = vsel %vm1248, %v1241, %v1209
        %1250 = vst [vmem:[#allocation3] sm:$0xff] %v1249
        %p1251 = scmp.eq.s32.totalorder %s27, 1
        // Predicated region
        $region57: #{tpu_custom_call.1} parent=43 // pred_check
          %p1252 = pneg %p1251
        $region58: #{tpu_custom_call.1} parent=43 // pred_check_branch
          %1254 = sbr.rel (%p1252) target = $region60
        $region59: #{tpu_custom_call.1} parent=43 // pred_region
          %v1255 = vmul.u32 %v349, 2
          %1256 = vset.pattern.permute.xlu0 0
          %1257 = vperm.xlu0 %1256, %v1255
          %v1258 = vpop.permute.xlu0 %1257
          %vm1259 = vcmp.eq.s32.totalorder %v400, %v1258
          %v1260 = vsel %vm1259, %v1249, -1e+30
          %1261 = vmax.xlane.f32.xlu0 %v1260
          %v1262 = vpop.xlane.xlu0 %1261
          %v1263 = vsub.s32 %v1255, 1
          %1264 = vset.pattern.permute.xlu0 0
          %1265 = vperm.xlu0 %1264, %v1263
          %v1266 = vpop.permute.xlu0 %1265
          %vm1267 = vcmp.eq.s32.totalorder %v400, %v1266
          %vm1268 = vmand %vm1267, %vm429
          %v1269 = vsel %vm1268, %v1249, -1e+30
          %1270 = vmax.xlane.f32.xlu0 %v1269
          %v1271 = vpop.xlane.xlu0 %1270
          %v1272 = vmax.f32 %v1262, %v1271
          %v1273 = vsub.f32 %v1262, %v1272
          %v1274 = vmul.f32 %v1273, 1.442695
          %v1275 = vpow.pop %v1274
          %v1276 = vsub.f32 %v1271, %v1272
          %v1277 = vmul.f32 %v1276, 1.442695
          %v1278 = vpow.pop %v1277
          %v1279 = vadd.f32 %v1275, %v1278
          %v1280 = vlog2.pop %v1279
          %v1281 = vmul.f32 %v1280, 0.6931472
          %v1282 = vadd.f32 %v1272, %v1281
          %v1283 = vsub.f32 0.0, %v1282
          %vm1284 = vcmp.gt.f32.partialorder %v1283, 1e+29
          %v1285 = vsel %vm1284, 0.0, %v1283
          %vm1286 = vcmp.gt.s32.totalorder %v349, 1
          %v1287 = vsel %vm1286, %v349, 1
          %v1288 = vcvt.s32.f32 %v1287
          %v1289 = vrcp.pop %v1288
          %v1290 = vmul.f32 %v1288, %v1289
          %v1291 = vsub.f32 1.0, %v1290
          %v1292 = vmul.f32 %v1289, %v1291
          %v1293 = vadd.f32 %v1289, %v1292
          %vm1294 = vweird.f32 %v1288
          %vm1295 = vweird.f32 %v1289
          %vm1296 = vmor %vm1294, %vm1295
          %v1297 = vsel %vm1296, %v1289, %v1293
          %v1298 = vand.u32 2147483647, %v1288
          %vm1299 = vcmp.eq.f32.partialorder %v1298, 8.507059e+37
          %v1300 = vand.u32 %v1288, 2147483648
          %v1301 = vor.u32 1.1754944e-38, %v1300
          %v1302 = vsel %vm1299, %v1301, %v1297
          %v1303 = vmul.f32 %v1285, %v1302
          %1305 = vset.pattern.permute.xlu0 0
          %1306 = vperm.xlu0 %1305, %v1303
          %v1307 = vpop.permute.xlu0 %1306
          %1309 = vst [vmem:[#allocation9] sm:$0xff] %v1307
        $region60: #{tpu_custom_call.1} parent=43 // pred_fallthru
          _
        // Predicated region
        $region61: #{tpu_custom_call.1} parent=43 // pred_check
          %p1310 = pneg %p200
        $region62: #{tpu_custom_call.1} parent=43 // pred_check_branch
          %1312 = sbr.rel (%p1310) target = $region64
        $region63: #{tpu_custom_call.1} parent=43 // pred_region
          %1314 = vsyncadd [#allocation6], 0
          %s1315 = smul.addr %s26, 8
          %s1316 = scalar_lea.hbm %s6, %s1315
          %s1318 = sshll.u32 [#allocation9], 4
          %s1319 = int_to_ptr.vmem [resolvable:$true] %s1318
          %s1320 = sshll.u32 %s1316, 4
          %s1321 = int_to_ptr.hbm [resolvable:$true] %s1320
          %1323 = dma.vmem_to_hbm [thread:$0]  %s1319, 128, %s1321, [#allocation6]
        $region64: #{tpu_custom_call.1} parent=43 // pred_fallthru
          _
        // Predicated region
        $region65: #{tpu_custom_call.1} parent=43 // pred_check
          %p1324 = pneg %p200
        $region66: #{tpu_custom_call.1} parent=43 // pred_check_branch
          %1326 = sbr.rel (%p1324) target = $region68
        $region67: #{tpu_custom_call.1} parent=43 // pred_region
          %1328 = dma.done [#allocation6], 128
        $region68: #{tpu_custom_call.1} parent=43 // pred_fallthru
          _
      $region44: #{tpu_custom_call.1} parent=5 // pred_fallthru
        _
      %p1329 = scmp.le.s32.totalorder 2, %s17
      // Predicated region
      $region69: #{tpu_custom_call.1} parent=5 // pred_check
        %p1330 = pneg %p1329
      $region70: #{tpu_custom_call.1} parent=5 // pred_check_branch
        %1332 = sbr.rel (%p1330) target = $region72
      $region71: #{tpu_custom_call.1} parent=5 // pred_region
        %s1333 = ssub.s32 %s17, 2
      $region72: #{tpu_custom_call.1} parent=5 // pred_fallthru
        _
    $region6: #{tpu_custom_call.1} parent=1 // loop_footer
      %s21 = sadd.s32 1, %s17
    $region7: #{tpu_custom_call.1} parent=1 // loop_footer_branch
      %16 = sbr.rel target = $region3
    $region8: #{tpu_custom_call.1} parent=1 // loop_exit
      _
    %1334 = vsyncpa [#allocation5], 1
    %s1335 = scalar_lea.sflag [#allocation5], 1
    %1336 = vsyncpa %s1335, 1
    %1337 = vsyncpa [#allocation8], 1
    %s1338 = scalar_lea.sflag [#allocation8], 1
    %1339 = vsyncpa %s1338, 1
    %1340 = vsyncpa [#allocation6], 1
    %s1341 = scalar_lea.sflag [#allocation6], 1
    %1342 = vsyncpa %s1341, 1

</llo_original>
